<compile_context>
chip_gen: v6e
topology: v6e:2x2x1
jax: 0.10.0
libtpu: 0.0.40
codegen_flags: <defaults>
</compile_context>

<pallas_src>
import functools

import jax
import jax.numpy as jnp
from jax import lax
from jax.experimental import pallas as pl
from jax.experimental.pallas import tpu as pltpu


def _round_up(x, m):
    return (x + m - 1) // m * m


def _cdiv(a, b):
    return (a + b - 1) // b


def _device_kind():
    try:
        return jax.devices()[0].device_kind.lower()
    except Exception:
        return ""


def _is_v7x():
    k = _device_kind()
    return "v7" in k or "7x" in k


def _gate_compute_dtype():
    """bf16 elementwise/EUP math on v6e/v7x; f32 on v5e and older (no bf16 VPU/EUP)."""
    k = _device_kind()
    if "v6" in k or "v7" in k or "7x" in k:
        return jnp.bfloat16
    return jnp.float32


def _vmem_limit_bytes(Tc, Bt, Ip, Hp, Op):
    """VMEM budget derived from actual tile sizes, with a generation-aware cap."""
    need = (
        2 * Tc * Bt * Ip * 2                      # double-buffered x chunk (bf16)
        + (Ip + Hp) * 4 * Hp * 2 + 4 * Hp * 4     # resident W_ih^T, W_hh^T, bias
        + Hp * Op * 2 + Op * 4                    # resident fc weight / bias
        + 2 * Bt * (Op + 2 * Hp) * 4              # double-buffered f32 outputs
        + Tc * Bt * 4 * Hp * 2                    # bf16 xg scratch
        + Bt * Hp * 8                             # h/c carry scratch
    )
    budget = int(need * 1.5) + (8 << 20)
    cap = (48 << 20) if _is_v7x() else (100 << 20)   # v7x physical VMEM is 64 MiB
    return int(max(32 << 20, min(budget, cap)))


def lstm_kernel(x_ref, wih_ref, whh_ref, b_ref, fcw_ref, fcb_ref,
                out_ref, hn_ref, cn_ref,
                xg_ref, h_ref, c_ref,
                *, total_T, mask_time, unroll):
    """One grid step = (batch tile, time chunk).  h/c persist in VMEM scratch."""
    Tc, Bt, Ip = x_ref.shape
    Hp = whh_ref.shape[0]            # padded hidden size (multiple of 128)
    gate_dtype = h_ref.dtype

    tc = pl.program_id(1)
    nt = pl.num_programs(1)

    # ---- init carried state at the start of each batch tile's time sweep ----
    @pl.when(tc == 0)
    def _():
        h_ref[...] = jnp.zeros_like(h_ref)
        c_ref[...] = jnp.zeros_like(c_ref)

    # ---- input projection for this whole T-chunk: one big MXU matmul ----
    x_all = x_ref[...].reshape(Tc * Bt, Ip)                       # bf16
    xg = jnp.dot(x_all, wih_ref[...],
                 preferred_element_type=jnp.float32) + b_ref[...]
    xg_ref[...] = xg.reshape(Tc, Bt, 4 * Hp).astype(xg_ref.dtype)  # bf16 scratch

    # ---- recurrence over this chunk; c stays f32, gate math in gate_dtype ----
    h0 = h_ref[...]
    c0 = c_ref[...]
    t_base = tc * Tc

    def step(t, carry):
        h, c = carry
        gates = xg_ref[t].astype(jnp.float32) + jnp.dot(
            h.astype(jnp.bfloat16), whh_ref[...],
            preferred_element_type=jnp.float32)
        g = gates.astype(gate_dtype)
        i_g = jax.nn.sigmoid(g[:, 0 * Hp:1 * Hp])
        f_g = jax.nn.sigmoid(g[:, 1 * Hp:2 * Hp])
        g_g = jnp.tanh(g[:, 2 * Hp:3 * Hp])
        o_g = jax.nn.sigmoid(g[:, 3 * Hp:4 * Hp])
        c_new = (f_g.astype(jnp.float32) * c
                 + i_g.astype(jnp.float32) * g_g.astype(jnp.float32))
        h_new = (o_g * jnp.tanh(c_new).astype(gate_dtype)).astype(gate_dtype)
        if mask_time:                         # only traced when T % Tc != 0
            valid = (t_base + t) < total_T
            h_new = jnp.where(valid, h_new, h)
            c_new = jnp.where(valid, c_new, c)
        return h_new, c_new

    h, c = lax.fori_loop(0, Tc, step, (h0, c0), unroll=unroll)
    h_ref[...] = h
    c_ref[...] = c

    # ---- final FC + state outputs, once per batch tile (last time chunk) ----
    @pl.when(tc == nt - 1)
    def _():
        out_ref[...] = (jnp.dot(h.astype(jnp.bfloat16), fcw_ref[...],
                                preferred_element_type=jnp.float32)
                        + fcb_ref[...])
        hn_ref[...] = h.astype(jnp.float32)
        cn_ref[...] = c


def lstm_forward(x, params, *, batch_tile_target=256, time_chunk=64):
    """x: (B, T, I) float32.  Returns (output, (hn, cn)) like the torch module."""
    B, T, I = x.shape
    H = params["hidden_size"]
    O = params["output_size"]

    Ip = _round_up(I, 128)
    Hp = _round_up(H, 128)
    Op = _round_up(O, 128)

    # ---- batch tiling: minimal padding; >= 2 tiles when possible (dual TC) ----
    Bp8 = _round_up(B, 8)
    n_tiles = _cdiv(Bp8, batch_tile_target)
    if Bp8 >= 16:
        n_tiles = max(n_tiles, 2)
    Bt = _round_up(_cdiv(Bp8, n_tiles), 8)
    nb = _cdiv(Bp8, Bt)
    Bp = nb * Bt

    # ---- time chunking: VMEM bounded at O(Tc) regardless of sequence length ----
    Tc = min(T, time_chunk)
    nt = _cdiv(T, Tc)
    Tp = nt * Tc
    mask_time = (T % Tc) != 0
    unroll = True if Tc <= 32 else 4

    gate_dtype = _gate_compute_dtype()

    # Time-major, zero-padded, bf16 x (one cheap host-side prep op).
    x_tm = jnp.transpose(x, (1, 0, 2))
    x_tm = jnp.pad(x_tm, ((0, Tp - T), (0, Bp - B), (0, Ip - I))).astype(jnp.bfloat16)

    kernel = functools.partial(lstm_kernel, total_T=T, mask_time=mask_time,
                               unroll=unroll)

    grid_spec = pltpu.PrefetchScalarGridSpec(
        num_scalar_prefetch=0,
        grid=(nb, nt),
        in_specs=[
            pl.BlockSpec((Tc, Bt, Ip), lambda b, t: (t, b, 0)),   # x time-chunk
            pl.BlockSpec((Ip, 4 * Hp), lambda b, t: (0, 0)),      # W_ih^T (resident)
            pl.BlockSpec((Hp, 4 * Hp), lambda b, t: (0, 0)),      # W_hh^T (resident)
            pl.BlockSpec((1, 4 * Hp), lambda b, t: (0, 0)),       # b_ih + b_hh (f32)
            pl.BlockSpec((Hp, Op), lambda b, t: (0, 0)),          # fc W^T
            pl.BlockSpec((1, Op), lambda b, t: (0, 0)),           # fc b (f32)
        ],
        out_specs=[
            pl.BlockSpec((Bt, Op), lambda b, t: (b, 0)),          # fc output
            pl.BlockSpec((Bt, Hp), lambda b, t: (b, 0)),          # h_n
            pl.BlockSpec((Bt, Hp), lambda b, t: (b, 0)),          # c_n
        ],
        scratch_shapes=[
            pltpu.VMEM((Tc, Bt, 4 * Hp), jnp.bfloat16),           # xg chunk (bf16)
            pltpu.VMEM((Bt, Hp), gate_dtype),                     # h carry
            pltpu.VMEM((Bt, Hp), jnp.float32),                    # c carry (f32)
        ],
    )

    out, hn, cn = pl.pallas_call(
        kernel,
        out_shape=(
            jax.ShapeDtypeStruct((Bp, Op), jnp.float32),
            jax.ShapeDtypeStruct((Bp, Hp), jnp.float32),
            jax.ShapeDtypeStruct((Bp, Hp), jnp.float32),
        ),
        grid_spec=grid_spec,
        compiler_params=pltpu.CompilerParams(
            dimension_semantics=("parallel", "arbitrary"),
            vmem_limit_bytes=_vmem_limit_bytes(Tc, Bt, Ip, Hp, Op),
        ),
    )(x_tm, params["wih_p"], params["whh_p"], params["bias_p"],
      params["fcw_p"], params["fcb_p"])

    # num_layers = 1 -> leading layer axis of size 1 (PyTorch convention)
    return out[:B, :O], (hn[:B, :H][None], cn[:B, :H][None])


# ----------------------------- parameter prep -----------------------------

def init_params(key, input_size, hidden_size, output_size):
    """PyTorch-style init: uniform(-1/sqrt(H), 1/sqrt(H)) for every parameter."""
    k = 1.0 / float(hidden_size) ** 0.5
    keys = jax.random.split(key, 6)
    H, I, O = hidden_size, input_size, output_size
    return {
        "w_ih": jax.random.uniform(keys[0], (4 * H, I), jnp.float32, -k, k),
        "w_hh": jax.random.uniform(keys[1], (4 * H, H), jnp.float32, -k, k),
        "b_ih": jax.random.uniform(keys[2], (4 * H,), jnp.float32, -k, k),
        "b_hh": jax.random.uniform(keys[3], (4 * H,), jnp.float32, -k, k),
        "fc_w": jax.random.uniform(keys[4], (O, H), jnp.float32, -k, k),
        "fc_b": jax.random.uniform(keys[5], (O,), jnp.float32, -k, k),
    }


def _pack_gate_matrix(w, in_dim, in_pad, H, Hp):
    """(4H, in_dim) PyTorch gate-stacked weight -> (in_pad, 4*Hp) lane-aligned W^T."""
    w4 = w.reshape(4, H, in_dim)                 # gate-major [i, f, g, o]
    w4 = jnp.transpose(w4, (2, 0, 1))            # (in_dim, 4, H)
    w4 = jnp.pad(w4, ((0, in_pad - in_dim), (0, 0), (0, Hp - H)))
    return w4.reshape(in_pad, 4 * Hp)


def pack_params(raw, input_size, hidden_size, output_size):
    I, H, O = input_size, hidden_size, output_size
    Ip, Hp, Op = _round_up(I, 128), _round_up(H, 128), _round_up(O, 128)
    bias = raw["b_ih"] + raw["b_hh"]
    bias_p = jnp.pad(bias.reshape(4, H), ((0, 0), (0, Hp - H))).reshape(1, 4 * Hp)
    fcw_p = jnp.pad(raw["fc_w"].T, ((0, Hp - H), (0, Op - O)))
    fcb_p = jnp.pad(raw["fc_b"], (0, Op - O)).reshape(1, Op)
    return {
        "hidden_size": H,
        "output_size": O,
        "wih_p": _pack_gate_matrix(raw["w_ih"], I, Ip, H, Hp).astype(jnp.bfloat16),
        "whh_p": _pack_gate_matrix(raw["w_hh"], H, Hp, H, Hp).astype(jnp.bfloat16),
        "bias_p": bias_p,                         # keep bias in f32
        "fcw_p": fcw_p.astype(jnp.bfloat16),
        "fcb_p": fcb_p,                           # keep fc bias in f32
    }


# ------------------------------- reference --------------------------------

def _reference(x, raw):
    """Pure-JAX f32 reference matching the PyTorch module semantics."""
    B, T, I = x.shape
    H = raw["w_hh"].shape[1]
    wih_t, whh_t = raw["w_ih"].T, raw["w_hh"].T
    bias = raw["b_ih"] + raw["b_hh"]

    def step(carry, x_t):
        h, c = carry
        gates = x_t @ wih_t + h @ whh_t + bias
        i = jax.nn.sigmoid(gates[:, 0 * H:1 * H])
        f = jax.nn.sigmoid(gates[:, 1 * H:2 * H])
        g = jnp.tanh(gates[:, 2 * H:3 * H])
        o = jax.nn.sigmoid(gates[:, 3 * H:4 * H])
        c = f * c + i * g
        h = o * jnp.tanh(c)
        return (h, c), None

    h0 = jnp.zeros((B, H), jnp.float32)
    c0 = jnp.zeros((B, H), jnp.float32)
    (h, c), _ = lax.scan(step, (h0, c0), jnp.transpose(x, (1, 0, 2)))
    out = h @ raw["fc_w"].T + raw["fc_b"]
    return out, (h[None], c[None])


if __name__ == "__main__":
    B, T, I, H, O = 2, 8, 4, 32, 4

    key = jax.random.PRNGKey(0)
    kx, kp = jax.random.split(key)
    x = jax.random.normal(kx, (B, T, I), jnp.float32)

    raw = init_params(kp, I, H, O)
    params = pack_params(raw, I, H, O)

    out, (hn, cn) = lstm_forward(x, params)
    jax.block_until_ready((out, hn, cn))

    ref_out, (ref_hn, ref_cn) = _reference(x, raw)
    assert out.shape == (B, O) and hn.shape == (1, B, H) and cn.shape == (1, B, H)
    # bf16 weights/inputs/gate-math (f32 accumulation) -> loosened tolerance
    assert jnp.allclose(out, ref_out, atol=5e-2), float(jnp.abs(out - ref_out).max())
    assert jnp.allclose(hn, ref_hn, atol=5e-2), float(jnp.abs(hn - ref_hn).max())
    assert jnp.allclose(cn, ref_cn, atol=5e-2), float(jnp.abs(cn - ref_cn).max())

    print("KERNEL_OK")
</pallas_src>

<mosaic_0001>
module attributes {stable_mosaic.version = 11 : i64} {
  func.func @lstm_kernel(%arg0: i32, %arg1: i32, %arg2: memref<8x8x128xbf16, #tpu.memory_space<vmem>>, %arg3: memref<128x512xbf16, #tpu.memory_space<vmem>>, %arg4: memref<128x512xbf16, #tpu.memory_space<vmem>>, %arg5: memref<1x512xf32, #tpu.memory_space<vmem>>, %arg6: memref<128x128xbf16, #tpu.memory_space<vmem>>, %arg7: memref<1x128xf32, #tpu.memory_space<vmem>>, %arg8: memref<8x128xf32, #tpu.memory_space<vmem>>, %arg9: memref<8x128xf32, #tpu.memory_space<vmem>>, %arg10: memref<8x128xf32, #tpu.memory_space<vmem>>, %arg11: memref<8x8x512xbf16, #tpu.memory_space<vmem>>, %arg12: memref<8x128xf32, #tpu.memory_space<vmem>>, %arg13: memref<8x128xf32, #tpu.memory_space<vmem>>) attributes {dimension_semantics = [#tpu.dimension_semantics<parallel>, #tpu.dimension_semantics<arbitrary>], iteration_bounds = array<i64: 1, 1>, scalar_prefetch = 0 : i64, scratch_operands = 3 : i64, tpu.core_type = #tpu.core_type<tc>, window_params = [{transform_indices = @transform_0, window_bounds = array<i64: 8, 8, 128>}, {pipeline_mode = #tpu.pipeline_mode<synchronous>, transform_indices = @transform_1, window_bounds = array<i64: 128, 512>}, {pipeline_mode = #tpu.pipeline_mode<synchronous>, transform_indices = @transform_2, window_bounds = array<i64: 128, 512>}, {pipeline_mode = #tpu.pipeline_mode<synchronous>, transform_indices = @transform_3, window_bounds = array<i64: 1, 512>}, {pipeline_mode = #tpu.pipeline_mode<synchronous>, transform_indices = @transform_4, window_bounds = array<i64: 128, 128>}, {pipeline_mode = #tpu.pipeline_mode<synchronous>, transform_indices = @transform_5, window_bounds = array<i64: 1, 128>}, {transform_indices = @transform_6, window_bounds = array<i64: 8, 128>}, {transform_indices = @transform_7, window_bounds = array<i64: 8, 128>}, {transform_indices = @transform_8, window_bounds = array<i64: 8, 128>}]} {
    %c0_i32 = arith.constant 0 : i32
    %0 = arith.cmpi eq, %arg1, %c0_i32 : i32
    %1 = arith.extui %0 : i1 to i32
    %c0_i32_0 = arith.constant 0 : i32
    %2 = arith.cmpi ne, %1, %c0_i32_0 : i32
    scf.if %2 {
      %cst_85 = arith.constant 0.000000e+00 : f32
      %284 = vector.broadcast %cst_85 : f32 to vector<8x128xf32>
      %c0_86 = arith.constant 0 : index
      %c0_87 = arith.constant 0 : index
      %285 = vector.load %arg12[%c0_86, %c0_87] : memref<8x128xf32, #tpu.memory_space<vmem>>, vector<8x128xf32>
      tpu.vector_store %arg12[%c0_86, %c0_87], %284 {strides = array<i32>} : memref<8x128xf32, #tpu.memory_space<vmem>>, vector<8x128xf32>,
      %cst_88 = arith.constant 0.000000e+00 : f32
      %286 = vector.broadcast %cst_88 : f32 to vector<8x128xf32>
      %c0_89 = arith.constant 0 : index
      %c0_90 = arith.constant 0 : index
      %287 = vector.load %arg13[%c0_89, %c0_90] : memref<8x128xf32, #tpu.memory_space<vmem>>, vector<8x128xf32>
      tpu.vector_store %arg13[%c0_89, %c0_90], %286 {strides = array<i32>} : memref<8x128xf32, #tpu.memory_space<vmem>>, vector<8x128xf32>,
    } else {
    }
    %c0 = arith.constant 0 : index
    %c0_1 = arith.constant 0 : index
    %c0_2 = arith.constant 0 : index
    %3 = vector.load %arg2[%c0, %c0_1, %c0_2] : memref<8x8x128xbf16, #tpu.memory_space<vmem>>, vector<8x8x128xbf16>
    %4 = vector.shape_cast %3 : vector<8x8x128xbf16> to vector<64x128xbf16>
    %c0_3 = arith.constant 0 : index
    %c0_4 = arith.constant 0 : index
    %5 = vector.load %arg3[%c0_3, %c0_4] : memref<128x512xbf16, #tpu.memory_space<vmem>>, vector<128x512xbf16>
    %cst = arith.constant dense<0.000000e+00> : vector<64x512xf32>
    %6 = tpu.matmul %4, %5, %cst {dimension_numbers = #tpu.dot_dimension_numbers<[1], [0], [0], [1], [0, 0, 1, 1], [], []>} : vector<64x128xbf16>, vector<128x512xbf16>, vector<64x512xf32> -> vector<64x512xf32>
    %c0_5 = arith.constant 0 : index
    %c0_6 = arith.constant 0 : index
    %7 = vector.load %arg5[%c0_5, %c0_6] : memref<1x512xf32, #tpu.memory_space<vmem>>, vector<1x512xf32>
    %8 = vector.broadcast %7 : vector<1x512xf32> to vector<64x512xf32>
    %9 = arith.addf %6, %8 : vector<64x512xf32>
    %10 = vector.shape_cast %9 : vector<64x512xf32> to vector<8x8x512xf32>
    %11 = arith.truncf %10 : vector<8x8x512xf32> to vector<8x8x512xbf16>
    %c0_7 = arith.constant 0 : index
    %c0_8 = arith.constant 0 : index
    %c0_9 = arith.constant 0 : index
    %12 = vector.load %arg11[%c0_7, %c0_8, %c0_9] : memref<8x8x512xbf16, #tpu.memory_space<vmem>>, vector<8x8x512xbf16>
    tpu.vector_store %arg11[%c0_7, %c0_8, %c0_9], %11 {strides = array<i32>} : memref<8x8x512xbf16, #tpu.memory_space<vmem>>, vector<8x8x512xbf16>,
    %c0_10 = arith.constant 0 : index
    %c0_11 = arith.constant 0 : index
    %13 = vector.load %arg12[%c0_10, %c0_11] : memref<8x128xf32, #tpu.memory_space<vmem>>, vector<8x128xf32>
    %c0_12 = arith.constant 0 : index
    %c0_13 = arith.constant 0 : index
    %14 = vector.load %arg13[%c0_12, %c0_13] : memref<8x128xf32, #tpu.memory_space<vmem>>, vector<8x128xf32>
    %c0_i32_14 = arith.constant 0 : i32
    %15 = arith.index_cast %c0_i32_14 : i32 to index
    %c0_15 = arith.constant 0 : index
    %c0_16 = arith.constant 0 : index
    %16 = vector.load %arg11[%15, %c0_15, %c0_16] : memref<8x8x512xbf16, #tpu.memory_space<vmem>>, vector<1x8x512xbf16>
    %17 = vector.shape_cast %16 : vector<1x8x512xbf16> to vector<8x512xbf16>
    %18 = arith.extf %17 : vector<8x512xbf16> to vector<8x512xf32>
    %19 = arith.truncf %13 : vector<8x128xf32> to vector<8x128xbf16>
    %c0_17 = arith.constant 0 : index
    %c0_18 = arith.constant 0 : index
    %20 = vector.load %arg4[%c0_17, %c0_18] : memref<128x512xbf16, #tpu.memory_space<vmem>>, vector<128x512xbf16>
    %cst_19 = arith.constant dense<0.000000e+00> : vector<8x512xf32>
    %21 = tpu.matmul %19, %20, %cst_19 {dimension_numbers = #tpu.dot_dimension_numbers<[1], [0], [0], [1], [0, 0, 1, 1], [], []>} : vector<8x128xbf16>, vector<128x512xbf16>, vector<8x512xf32> -> vector<8x512xf32>
    %22 = arith.addf %18, %21 : vector<8x512xf32>
    %23 = vector.extract_strided_slice %22 {offsets = [0, 0], sizes = [8, 128], strides = [1, 1]} : vector<8x512xf32> to vector<8x128xf32>
    %24 = arith.negf %23 : vector<8x128xf32>
    %25 = math.exp %24 : vector<8x128xf32>
    %cst_20 = arith.constant 1.000000e+00 : f32
    %26 = vector.broadcast %cst_20 : f32 to vector<8x128xf32>
    %27 = arith.addf %26, %25 : vector<8x128xf32>
    %28 = arith.divf %26, %27 : vector<8x128xf32>
    %29 = vector.extract_strided_slice %22 {offsets = [0, 128], sizes = [8, 128], strides = [1, 1]} : vector<8x512xf32> to vector<8x128xf32>
    %30 = arith.negf %29 : vector<8x128xf32>
    %31 = math.exp %30 : vector<8x128xf32>
    %cst_21 = arith.constant 1.000000e+00 : f32
    %32 = vector.broadcast %cst_21 : f32 to vector<8x128xf32>
    %33 = arith.addf %32, %31 : vector<8x128xf32>
    %34 = arith.divf %32, %33 : vector<8x128xf32>
    %35 = vector.extract_strided_slice %22 {offsets = [0, 256], sizes = [8, 128], strides = [1, 1]} : vector<8x512xf32> to vector<8x128xf32>
    %36 = math.tanh %35 : vector<8x128xf32>
    %37 = vector.extract_strided_slice %22 {offsets = [0, 384], sizes = [8, 128], strides = [1, 1]} : vector<8x512xf32> to vector<8x128xf32>
    %38 = arith.negf %37 : vector<8x128xf32>
    %39 = math.exp %38 : vector<8x128xf32>
    %cst_22 = arith.constant 1.000000e+00 : f32
    %40 = vector.broadcast %cst_22 : f32 to vector<8x128xf32>
    %41 = arith.addf %40, %39 : vector<8x128xf32>
    %42 = arith.divf %40, %41 : vector<8x128xf32>
    %43 = arith.mulf %34, %14 : vector<8x128xf32>
    %44 = arith.mulf %28, %36 : vector<8x128xf32>
    %45 = arith.addf %43, %44 : vector<8x128xf32>
    %46 = math.tanh %45 : vector<8x128xf32>
    %47 = arith.mulf %42, %46 : vector<8x128xf32>
    %c1_i32 = arith.constant 1 : i32
    %48 = arith.index_cast %c1_i32 : i32 to index
    %c0_23 = arith.constant 0 : index
    %c0_24 = arith.constant 0 : index
    %49 = vector.load %arg11[%48, %c0_23, %c0_24] : memref<8x8x512xbf16, #tpu.memory_space<vmem>>, vector<1x8x512xbf16>
    %50 = vector.shape_cast %49 : vector<1x8x512xbf16> to vector<8x512xbf16>
    %51 = arith.extf %50 : vector<8x512xbf16> to vector<8x512xf32>
    %52 = arith.truncf %47 : vector<8x128xf32> to vector<8x128xbf16>
    %c0_25 = arith.constant 0 : index
    %c0_26 = arith.constant 0 : index
    %53 = vector.load %arg4[%c0_25, %c0_26] : memref<128x512xbf16, #tpu.memory_space<vmem>>, vector<128x512xbf16>
    %cst_27 = arith.constant dense<0.000000e+00> : vector<8x512xf32>
    %54 = tpu.matmul %52, %53, %cst_27 {dimension_numbers = #tpu.dot_dimension_numbers<[1], [0], [0], [1], [0, 0, 1, 1], [], []>} : vector<8x128xbf16>, vector<128x512xbf16>, vector<8x512xf32> -> vector<8x512xf32>
    %55 = arith.addf %51, %54 : vector<8x512xf32>
    %56 = vector.extract_strided_slice %55 {offsets = [0, 0], sizes = [8, 128], strides = [1, 1]} : vector<8x512xf32> to vector<8x128xf32>
    %57 = arith.negf %56 : vector<8x128xf32>
    %58 = math.exp %57 : vector<8x128xf32>
    %cst_28 = arith.constant 1.000000e+00 : f32
    %59 = vector.broadcast %cst_28 : f32 to vector<8x128xf32>
    %60 = arith.addf %59, %58 : vector<8x128xf32>
    %61 = arith.divf %59, %60 : vector<8x128xf32>
    %62 = vector.extract_strided_slice %55 {offsets = [0, 128], sizes = [8, 128], strides = [1, 1]} : vector<8x512xf32> to vector<8x128xf32>
    %63 = arith.negf %62 : vector<8x128xf32>
    %64 = math.exp %63 : vector<8x128xf32>
    %cst_29 = arith.constant 1.000000e+00 : f32
    %65 = vector.broadcast %cst_29 : f32 to vector<8x128xf32>
    %66 = arith.addf %65, %64 : vector<8x128xf32>
    %67 = arith.divf %65, %66 : vector<8x128xf32>
    %68 = vector.extract_strided_slice %55 {offsets = [0, 256], sizes = [8, 128], strides = [1, 1]} : vector<8x512xf32> to vector<8x128xf32>
    %69 = math.tanh %68 : vector<8x128xf32>
    %70 = vector.extract_strided_slice %55 {offsets = [0, 384], sizes = [8, 128], strides = [1, 1]} : vector<8x512xf32> to vector<8x128xf32>
    %71 = arith.negf %70 : vector<8x128xf32>
    %72 = math.exp %71 : vector<8x128xf32>
    %cst_30 = arith.constant 1.000000e+00 : f32
    %73 = vector.broadcast %cst_30 : f32 to vector<8x128xf32>
    %74 = arith.addf %73, %72 : vector<8x128xf32>
    %75 = arith.divf %73, %74 : vector<8x128xf32>
    %76 = arith.mulf %67, %45 : vector<8x128xf32>
    %77 = arith.mulf %61, %69 : vector<8x128xf32>
    %78 = arith.addf %76, %77 : vector<8x128xf32>
    %79 = math.tanh %78 : vector<8x128xf32>
    %80 = arith.mulf %75, %79 : vector<8x128xf32>
    %c2_i32 = arith.constant 2 : i32
    %81 = arith.index_cast %c2_i32 : i32 to index
    %c0_31 = arith.constant 0 : index
    %c0_32 = arith.constant 0 : index
    %82 = vector.load %arg11[%81, %c0_31, %c0_32] : memref<8x8x512xbf16, #tpu.memory_space<vmem>>, vector<1x8x512xbf16>
    %83 = vector.shape_cast %82 : vector<1x8x512xbf16> to vector<8x512xbf16>
    %84 = arith.extf %83 : vector<8x512xbf16> to vector<8x512xf32>
    %85 = arith.truncf %80 : vector<8x128xf32> to vector<8x128xbf16>
    %c0_33 = arith.constant 0 : index
    %c0_34 = arith.constant 0 : index
    %86 = vector.load %arg4[%c0_33, %c0_34] : memref<128x512xbf16, #tpu.memory_space<vmem>>, vector<128x512xbf16>
    %cst_35 = arith.constant dense<0.000000e+00> : vector<8x512xf32>
    %87 = tpu.matmul %85, %86, %cst_35 {dimension_numbers = #tpu.dot_dimension_numbers<[1], [0], [0], [1], [0, 0, 1, 1], [], []>} : vector<8x128xbf16>, vector<128x512xbf16>, vector<8x512xf32> -> vector<8x512xf32>
    %88 = arith.addf %84, %87 : vector<8x512xf32>
    %89 = vector.extract_strided_slice %88 {offsets = [0, 0], sizes = [8, 128], strides = [1, 1]} : vector<8x512xf32> to vector<8x128xf32>
    %90 = arith.negf %89 : vector<8x128xf32>
    %91 = math.exp %90 : vector<8x128xf32>
    %cst_36 = arith.constant 1.000000e+00 : f32
    %92 = vector.broadcast %cst_36 : f32 to vector<8x128xf32>
    %93 = arith.addf %92, %91 : vector<8x128xf32>
    %94 = arith.divf %92, %93 : vector<8x128xf32>
    %95 = vector.extract_strided_slice %88 {offsets = [0, 128], sizes = [8, 128], strides = [1, 1]} : vector<8x512xf32> to vector<8x128xf32>
    %96 = arith.negf %95 : vector<8x128xf32>
    %97 = math.exp %96 : vector<8x128xf32>
    %cst_37 = arith.constant 1.000000e+00 : f32
    %98 = vector.broadcast %cst_37 : f32 to vector<8x128xf32>
    %99 = arith.addf %98, %97 : vector<8x128xf32>
    %100 = arith.divf %98, %99 : vector<8x128xf32>
    %101 = vector.extract_strided_slice %88 {offsets = [0, 256], sizes = [8, 128], strides = [1, 1]} : vector<8x512xf32> to vector<8x128xf32>
    %102 = math.tanh %101 : vector<8x128xf32>
    %103 = vector.extract_strided_slice %88 {offsets = [0, 384], sizes = [8, 128], strides = [1, 1]} : vector<8x512xf32> to vector<8x128xf32>
    %104 = arith.negf %103 : vector<8x128xf32>
    %105 = math.exp %104 : vector<8x128xf32>
    %cst_38 = arith.constant 1.000000e+00 : f32
    %106 = vector.broadcast %cst_38 : f32 to vector<8x128xf32>
    %107 = arith.addf %106, %105 : vector<8x128xf32>
    %108 = arith.divf %106, %107 : vector<8x128xf32>
    %109 = arith.mulf %100, %78 : vector<8x128xf32>
    %110 = arith.mulf %94, %102 : vector<8x128xf32>
    %111 = arith.addf %109, %110 : vector<8x128xf32>
    %112 = math.tanh %111 : vector<8x128xf32>
    %113 = arith.mulf %108, %112 : vector<8x128xf32>
    %c3_i32 = arith.constant 3 : i32
    %114 = arith.index_cast %c3_i32 : i32 to index
    %c0_39 = arith.constant 0 : index
    %c0_40 = arith.constant 0 : index
    %115 = vector.load %arg11[%114, %c0_39, %c0_40] : memref<8x8x512xbf16, #tpu.memory_space<vmem>>, vector<1x8x512xbf16>
    %116 = vector.shape_cast %115 : vector<1x8x512xbf16> to vector<8x512xbf16>
    %117 = arith.extf %116 : vector<8x512xbf16> to vector<8x512xf32>
    %118 = arith.truncf %113 : vector<8x128xf32> to vector<8x128xbf16>
    %c0_41 = arith.constant 0 : index
    %c0_42 = arith.constant 0 : index
    %119 = vector.load %arg4[%c0_41, %c0_42] : memref<128x512xbf16, #tpu.memory_space<vmem>>, vector<128x512xbf16>
    %cst_43 = arith.constant dense<0.000000e+00> : vector<8x512xf32>
    %120 = tpu.matmul %118, %119, %cst_43 {dimension_numbers = #tpu.dot_dimension_numbers<[1], [0], [0], [1], [0, 0, 1, 1], [], []>} : vector<8x128xbf16>, vector<128x512xbf16>, vector<8x512xf32> -> vector<8x512xf32>
    %121 = arith.addf %117, %120 : vector<8x512xf32>
    %122 = vector.extract_strided_slice %121 {offsets = [0, 0], sizes = [8, 128], strides = [1, 1]} : vector<8x512xf32> to vector<8x128xf32>
    %123 = arith.negf %122 : vector<8x128xf32>
    %124 = math.exp %123 : vector<8x128xf32>
    %cst_44 = arith.constant 1.000000e+00 : f32
    %125 = vector.broadcast %cst_44 : f32 to vector<8x128xf32>
    %126 = arith.addf %125, %124 : vector<8x128xf32>
    %127 = arith.divf %125, %126 : vector<8x128xf32>
    %128 = vector.extract_strided_slice %121 {offsets = [0, 128], sizes = [8, 128], strides = [1, 1]} : vector<8x512xf32> to vector<8x128xf32>
    %129 = arith.negf %128 : vector<8x128xf32>
    %130 = math.exp %129 : vector<8x128xf32>
    %cst_45 = arith.constant 1.000000e+00 : f32
    %131 = vector.broadcast %cst_45 : f32 to vector<8x128xf32>
    %132 = arith.addf %131, %130 : vector<8x128xf32>
    %133 = arith.divf %131, %132 : vector<8x128xf32>
    %134 = vector.extract_strided_slice %121 {offsets = [0, 256], sizes = [8, 128], strides = [1, 1]} : vector<8x512xf32> to vector<8x128xf32>
    %135 = math.tanh %134 : vector<8x128xf32>
    %136 = vector.extract_strided_slice %121 {offsets = [0, 384], sizes = [8, 128], strides = [1, 1]} : vector<8x512xf32> to vector<8x128xf32>
    %137 = arith.negf %136 : vector<8x128xf32>
    %138 = math.exp %137 : vector<8x128xf32>
    %cst_46 = arith.constant 1.000000e+00 : f32
    %139 = vector.broadcast %cst_46 : f32 to vector<8x128xf32>
    %140 = arith.addf %139, %138 : vector<8x128xf32>
    %141 = arith.divf %139, %140 : vector<8x128xf32>
    %142 = arith.mulf %133, %111 : vector<8x128xf32>
    %143 = arith.mulf %127, %135 : vector<8x128xf32>
    %144 = arith.addf %142, %143 : vector<8x128xf32>
    %145 = math.tanh %144 : vector<8x128xf32>
    %146 = arith.mulf %141, %145 : vector<8x128xf32>
    %c4_i32 = arith.constant 4 : i32
    %147 = arith.index_cast %c4_i32 : i32 to index
    %c0_47 = arith.constant 0 : index
    %c0_48 = arith.constant 0 : index
    %148 = vector.load %arg11[%147, %c0_47, %c0_48] : memref<8x8x512xbf16, #tpu.memory_space<vmem>>, vector<1x8x512xbf16>
    %149 = vector.shape_cast %148 : vector<1x8x512xbf16> to vector<8x512xbf16>
    %150 = arith.extf %149 : vector<8x512xbf16> to vector<8x512xf32>
    %151 = arith.truncf %146 : vector<8x128xf32> to vector<8x128xbf16>
    %c0_49 = arith.constant 0 : index
    %c0_50 = arith.constant 0 : index
    %152 = vector.load %arg4[%c0_49, %c0_50] : memref<128x512xbf16, #tpu.memory_space<vmem>>, vector<128x512xbf16>
    %cst_51 = arith.constant dense<0.000000e+00> : vector<8x512xf32>
    %153 = tpu.matmul %151, %152, %cst_51 {dimension_numbers = #tpu.dot_dimension_numbers<[1], [0], [0], [1], [0, 0, 1, 1], [], []>} : vector<8x128xbf16>, vector<128x512xbf16>, vector<8x512xf32> -> vector<8x512xf32>
    %154 = arith.addf %150, %153 : vector<8x512xf32>
    %155 = vector.extract_strided_slice %154 {offsets = [0, 0], sizes = [8, 128], strides = [1, 1]} : vector<8x512xf32> to vector<8x128xf32>
    %156 = arith.negf %155 : vector<8x128xf32>
    %157 = math.exp %156 : vector<8x128xf32>
    %cst_52 = arith.constant 1.000000e+00 : f32
    %158 = vector.broadcast %cst_52 : f32 to vector<8x128xf32>
    %159 = arith.addf %158, %157 : vector<8x128xf32>
    %160 = arith.divf %158, %159 : vector<8x128xf32>
    %161 = vector.extract_strided_slice %154 {offsets = [0, 128], sizes = [8, 128], strides = [1, 1]} : vector<8x512xf32> to vector<8x128xf32>
    %162 = arith.negf %161 : vector<8x128xf32>
    %163 = math.exp %162 : vector<8x128xf32>
    %cst_53 = arith.constant 1.000000e+00 : f32
    %164 = vector.broadcast %cst_53 : f32 to vector<8x128xf32>
    %165 = arith.addf %164, %163 : vector<8x128xf32>
    %166 = arith.divf %164, %165 : vector<8x128xf32>
    %167 = vector.extract_strided_slice %154 {offsets = [0, 256], sizes = [8, 128], strides = [1, 1]} : vector<8x512xf32> to vector<8x128xf32>
    %168 = math.tanh %167 : vector<8x128xf32>
    %169 = vector.extract_strided_slice %154 {offsets = [0, 384], sizes = [8, 128], strides = [1, 1]} : vector<8x512xf32> to vector<8x128xf32>
    %170 = arith.negf %169 : vector<8x128xf32>
    %171 = math.exp %170 : vector<8x128xf32>
    %cst_54 = arith.constant 1.000000e+00 : f32
    %172 = vector.broadcast %cst_54 : f32 to vector<8x128xf32>
    %173 = arith.addf %172, %171 : vector<8x128xf32>
    %174 = arith.divf %172, %173 : vector<8x128xf32>
    %175 = arith.mulf %166, %144 : vector<8x128xf32>
    %176 = arith.mulf %160, %168 : vector<8x128xf32>
    %177 = arith.addf %175, %176 : vector<8x128xf32>
    %178 = math.tanh %177 : vector<8x128xf32>
    %179 = arith.mulf %174, %178 : vector<8x128xf32>
    %c5_i32 = arith.constant 5 : i32
    %180 = arith.index_cast %c5_i32 : i32 to index
    %c0_55 = arith.constant 0 : index
    %c0_56 = arith.constant 0 : index
    %181 = vector.load %arg11[%180, %c0_55, %c0_56] : memref<8x8x512xbf16, #tpu.memory_space<vmem>>, vector<1x8x512xbf16>
    %182 = vector.shape_cast %181 : vector<1x8x512xbf16> to vector<8x512xbf16>
    %183 = arith.extf %182 : vector<8x512xbf16> to vector<8x512xf32>
    %184 = arith.truncf %179 : vector<8x128xf32> to vector<8x128xbf16>
    %c0_57 = arith.constant 0 : index
    %c0_58 = arith.constant 0 : index
    %185 = vector.load %arg4[%c0_57, %c0_58] : memref<128x512xbf16, #tpu.memory_space<vmem>>, vector<128x512xbf16>
    %cst_59 = arith.constant dense<0.000000e+00> : vector<8x512xf32>
    %186 = tpu.matmul %184, %185, %cst_59 {dimension_numbers = #tpu.dot_dimension_numbers<[1], [0], [0], [1], [0, 0, 1, 1], [], []>} : vector<8x128xbf16>, vector<128x512xbf16>, vector<8x512xf32> -> vector<8x512xf32>
    %187 = arith.addf %183, %186 : vector<8x512xf32>
    %188 = vector.extract_strided_slice %187 {offsets = [0, 0], sizes = [8, 128], strides = [1, 1]} : vector<8x512xf32> to vector<8x128xf32>
    %189 = arith.negf %188 : vector<8x128xf32>
    %190 = math.exp %189 : vector<8x128xf32>
    %cst_60 = arith.constant 1.000000e+00 : f32
    %191 = vector.broadcast %cst_60 : f32 to vector<8x128xf32>
    %192 = arith.addf %191, %190 : vector<8x128xf32>
    %193 = arith.divf %191, %192 : vector<8x128xf32>
    %194 = vector.extract_strided_slice %187 {offsets = [0, 128], sizes = [8, 128], strides = [1, 1]} : vector<8x512xf32> to vector<8x128xf32>
    %195 = arith.negf %194 : vector<8x128xf32>
    %196 = math.exp %195 : vector<8x128xf32>
    %cst_61 = arith.constant 1.000000e+00 : f32
    %197 = vector.broadcast %cst_61 : f32 to vector<8x128xf32>
    %198 = arith.addf %197, %196 : vector<8x128xf32>
    %199 = arith.divf %197, %198 : vector<8x128xf32>
    %200 = vector.extract_strided_slice %187 {offsets = [0, 256], sizes = [8, 128], strides = [1, 1]} : vector<8x512xf32> to vector<8x128xf32>
    %201 = math.tanh %200 : vector<8x128xf32>
    %202 = vector.extract_strided_slice %187 {offsets = [0, 384], sizes = [8, 128], strides = [1, 1]} : vector<8x512xf32> to vector<8x128xf32>
    %203 = arith.negf %202 : vector<8x128xf32>
    %204 = math.exp %203 : vector<8x128xf32>
    %cst_62 = arith.constant 1.000000e+00 : f32
    %205 = vector.broadcast %cst_62 : f32 to vector<8x128xf32>
    %206 = arith.addf %205, %204 : vector<8x128xf32>
    %207 = arith.divf %205, %206 : vector<8x128xf32>
    %208 = arith.mulf %199, %177 : vector<8x128xf32>
    %209 = arith.mulf %193, %201 : vector<8x128xf32>
    %210 = arith.addf %208, %209 : vector<8x128xf32>
    %211 = math.tanh %210 : vector<8x128xf32>
    %212 = arith.mulf %207, %211 : vector<8x128xf32>
    %c6_i32 = arith.constant 6 : i32
    %213 = arith.index_cast %c6_i32 : i32 to index
    %c0_63 = arith.constant 0 : index
    %c0_64 = arith.constant 0 : index
    %214 = vector.load %arg11[%213, %c0_63, %c0_64] : memref<8x8x512xbf16, #tpu.memory_space<vmem>>, vector<1x8x512xbf16>
    %215 = vector.shape_cast %214 : vector<1x8x512xbf16> to vector<8x512xbf16>
    %216 = arith.extf %215 : vector<8x512xbf16> to vector<8x512xf32>
    %217 = arith.truncf %212 : vector<8x128xf32> to vector<8x128xbf16>
    %c0_65 = arith.constant 0 : index
    %c0_66 = arith.constant 0 : index
    %218 = vector.load %arg4[%c0_65, %c0_66] : memref<128x512xbf16, #tpu.memory_space<vmem>>, vector<128x512xbf16>
    %cst_67 = arith.constant dense<0.000000e+00> : vector<8x512xf32>
    %219 = tpu.matmul %217, %218, %cst_67 {dimension_numbers = #tpu.dot_dimension_numbers<[1], [0], [0], [1], [0, 0, 1, 1], [], []>} : vector<8x128xbf16>, vector<128x512xbf16>, vector<8x512xf32> -> vector<8x512xf32>
    %220 = arith.addf %216, %219 : vector<8x512xf32>
    %221 = vector.extract_strided_slice %220 {offsets = [0, 0], sizes = [8, 128], strides = [1, 1]} : vector<8x512xf32> to vector<8x128xf32>
    %222 = arith.negf %221 : vector<8x128xf32>
    %223 = math.exp %222 : vector<8x128xf32>
    %cst_68 = arith.constant 1.000000e+00 : f32
    %224 = vector.broadcast %cst_68 : f32 to vector<8x128xf32>
    %225 = arith.addf %224, %223 : vector<8x128xf32>
    %226 = arith.divf %224, %225 : vector<8x128xf32>
    %227 = vector.extract_strided_slice %220 {offsets = [0, 128], sizes = [8, 128], strides = [1, 1]} : vector<8x512xf32> to vector<8x128xf32>
    %228 = arith.negf %227 : vector<8x128xf32>
    %229 = math.exp %228 : vector<8x128xf32>
    %cst_69 = arith.constant 1.000000e+00 : f32
    %230 = vector.broadcast %cst_69 : f32 to vector<8x128xf32>
    %231 = arith.addf %230, %229 : vector<8x128xf32>
    %232 = arith.divf %230, %231 : vector<8x128xf32>
    %233 = vector.extract_strided_slice %220 {offsets = [0, 256], sizes = [8, 128], strides = [1, 1]} : vector<8x512xf32> to vector<8x128xf32>
    %234 = math.tanh %233 : vector<8x128xf32>
    %235 = vector.extract_strided_slice %220 {offsets = [0, 384], sizes = [8, 128], strides = [1, 1]} : vector<8x512xf32> to vector<8x128xf32>
    %236 = arith.negf %235 : vector<8x128xf32>
    %237 = math.exp %236 : vector<8x128xf32>
    %cst_70 = arith.constant 1.000000e+00 : f32
    %238 = vector.broadcast %cst_70 : f32 to vector<8x128xf32>
    %239 = arith.addf %238, %237 : vector<8x128xf32>
    %240 = arith.divf %238, %239 : vector<8x128xf32>
    %241 = arith.mulf %232, %210 : vector<8x128xf32>
    %242 = arith.mulf %226, %234 : vector<8x128xf32>
    %243 = arith.addf %241, %242 : vector<8x128xf32>
    %244 = math.tanh %243 : vector<8x128xf32>
    %245 = arith.mulf %240, %244 : vector<8x128xf32>
    %c7_i32 = arith.constant 7 : i32
    %246 = arith.index_cast %c7_i32 : i32 to index
    %c0_71 = arith.constant 0 : index
    %c0_72 = arith.constant 0 : index
    %247 = vector.load %arg11[%246, %c0_71, %c0_72] : memref<8x8x512xbf16, #tpu.memory_space<vmem>>, vector<1x8x512xbf16>
    %248 = vector.shape_cast %247 : vector<1x8x512xbf16> to vector<8x512xbf16>
    %249 = arith.extf %248 : vector<8x512xbf16> to vector<8x512xf32>
    %250 = arith.truncf %245 : vector<8x128xf32> to vector<8x128xbf16>
    %c0_73 = arith.constant 0 : index
    %c0_74 = arith.constant 0 : index
    %251 = vector.load %arg4[%c0_73, %c0_74] : memref<128x512xbf16, #tpu.memory_space<vmem>>, vector<128x512xbf16>
    %cst_75 = arith.constant dense<0.000000e+00> : vector<8x512xf32>
    %252 = tpu.matmul %250, %251, %cst_75 {dimension_numbers = #tpu.dot_dimension_numbers<[1], [0], [0], [1], [0, 0, 1, 1], [], []>} : vector<8x128xbf16>, vector<128x512xbf16>, vector<8x512xf32> -> vector<8x512xf32>
    %253 = arith.addf %249, %252 : vector<8x512xf32>
    %254 = vector.extract_strided_slice %253 {offsets = [0, 0], sizes = [8, 128], strides = [1, 1]} : vector<8x512xf32> to vector<8x128xf32>
    %255 = arith.negf %254 : vector<8x128xf32>
    %256 = math.exp %255 : vector<8x128xf32>
    %cst_76 = arith.constant 1.000000e+00 : f32
    %257 = vector.broadcast %cst_76 : f32 to vector<8x128xf32>
    %258 = arith.addf %257, %256 : vector<8x128xf32>
    %259 = arith.divf %257, %258 : vector<8x128xf32>
    %260 = vector.extract_strided_slice %253 {offsets = [0, 128], sizes = [8, 128], strides = [1, 1]} : vector<8x512xf32> to vector<8x128xf32>
    %261 = arith.negf %260 : vector<8x128xf32>
    %262 = math.exp %261 : vector<8x128xf32>
    %cst_77 = arith.constant 1.000000e+00 : f32
    %263 = vector.broadcast %cst_77 : f32 to vector<8x128xf32>
    %264 = arith.addf %263, %262 : vector<8x128xf32>
    %265 = arith.divf %263, %264 : vector<8x128xf32>
    %266 = vector.extract_strided_slice %253 {offsets = [0, 256], sizes = [8, 128], strides = [1, 1]} : vector<8x512xf32> to vector<8x128xf32>
    %267 = math.tanh %266 : vector<8x128xf32>
    %268 = vector.extract_strided_slice %253 {offsets = [0, 384], sizes = [8, 128], strides = [1, 1]} : vector<8x512xf32> to vector<8x128xf32>
    %269 = arith.negf %268 : vector<8x128xf32>
    %270 = math.exp %269 : vector<8x128xf32>
    %cst_78 = arith.constant 1.000000e+00 : f32
    %271 = vector.broadcast %cst_78 : f32 to vector<8x128xf32>
    %272 = arith.addf %271, %270 : vector<8x128xf32>
    %273 = arith.divf %271, %272 : vector<8x128xf32>
    %274 = arith.mulf %265, %243 : vector<8x128xf32>
    %275 = arith.mulf %259, %267 : vector<8x128xf32>
    %276 = arith.addf %274, %275 : vector<8x128xf32>
    %277 = math.tanh %276 : vector<8x128xf32>
    %278 = arith.mulf %273, %277 : vector<8x128xf32>
    %c8_i32 = arith.constant 8 : i32
    %c0_79 = arith.constant 0 : index
    %c0_80 = arith.constant 0 : index
    %279 = vector.load %arg12[%c0_79, %c0_80] : memref<8x128xf32, #tpu.memory_space<vmem>>, vector<8x128xf32>
    tpu.vector_store %arg12[%c0_79, %c0_80], %278 {strides = array<i32>} : memref<8x128xf32, #tpu.memory_space<vmem>>, vector<8x128xf32>,
    %c0_81 = arith.constant 0 : index
    %c0_82 = arith.constant 0 : index
    %280 = vector.load %arg13[%c0_81, %c0_82] : memref<8x128xf32, #tpu.memory_space<vmem>>, vector<8x128xf32>
    tpu.vector_store %arg13[%c0_81, %c0_82], %276 {strides = array<i32>} : memref<8x128xf32, #tpu.memory_space<vmem>>, vector<8x128xf32>,
    %c0_i32_83 = arith.constant 0 : i32
    %281 = arith.cmpi eq, %arg1, %c0_i32_83 : i32
    %282 = arith.extui %281 : i1 to i32
    %c0_i32_84 = arith.constant 0 : i32
    %283 = arith.cmpi ne, %282, %c0_i32_84 : i32
    scf.if %283 {
      %284 = arith.truncf %278 : vector<8x128xf32> to vector<8x128xbf16>
      %c0_85 = arith.constant 0 : index
      %c0_86 = arith.constant 0 : index
      %285 = vector.load %arg6[%c0_85, %c0_86] : memref<128x128xbf16, #tpu.memory_space<vmem>>, vector<128x128xbf16>
      %cst_87 = arith.constant dense<0.000000e+00> : vector<8x128xf32>
      %286 = tpu.matmul %284, %285, %cst_87 {dimension_numbers = #tpu.dot_dimension_numbers<[1], [0], [0], [1], [0, 0, 1, 1], [], []>} : vector<8x128xbf16>, vector<128x128xbf16>, vector<8x128xf32> -> vector<8x128xf32>
      %c0_88 = arith.constant 0 : index
      %c0_89 = arith.constant 0 : index
      %287 = vector.load %arg7[%c0_88, %c0_89] : memref<1x128xf32, #tpu.memory_space<vmem>>, vector<1x128xf32>
      %288 = vector.broadcast %287 : vector<1x128xf32> to vector<8x128xf32>
      %289 = arith.addf %286, %288 : vector<8x128xf32>
      %c0_90 = arith.constant 0 : index
      %c0_91 = arith.constant 0 : index
      %290 = vector.load %arg8[%c0_90, %c0_91] : memref<8x128xf32, #tpu.memory_space<vmem>>, vector<8x128xf32>
      tpu.vector_store %arg8[%c0_90, %c0_91], %289 {strides = array<i32>} : memref<8x128xf32, #tpu.memory_space<vmem>>, vector<8x128xf32>,
      %c0_92 = arith.constant 0 : index
      %c0_93 = arith.constant 0 : index
      %291 = vector.load %arg9[%c0_92, %c0_93] : memref<8x128xf32, #tpu.memory_space<vmem>>, vector<8x128xf32>
      tpu.vector_store %arg9[%c0_92, %c0_93], %278 {strides = array<i32>} : memref<8x128xf32, #tpu.memory_space<vmem>>, vector<8x128xf32>,
      %c0_94 = arith.constant 0 : index
      %c0_95 = arith.constant 0 : index
      %292 = vector.load %arg10[%c0_94, %c0_95] : memref<8x128xf32, #tpu.memory_space<vmem>>, vector<8x128xf32>
      tpu.vector_store %arg10[%c0_94, %c0_95], %276 {strides = array<i32>} : memref<8x128xf32, #tpu.memory_space<vmem>>, vector<8x128xf32>,
    } else {
    }
    return
  }
  func.func @transform_0(%arg0: i32, %arg1: i32) -> (i32, i32, i32) {
    %c0_i32 = arith.constant 0 : i32
    %c0_i32_0 = arith.constant 0 : i32
    return %arg1, %arg0, %c0_i32 : i32, i32, i32
  }
  func.func @transform_1(%arg0: i32, %arg1: i32) -> (i32, i32) {
    %c0_i32 = arith.constant 0 : i32
    %c0_i32_0 = arith.constant 0 : i32
    %c0_i32_1 = arith.constant 0 : i32
    return %c0_i32, %c0_i32_0 : i32, i32
  }
  func.func @transform_2(%arg0: i32, %arg1: i32) -> (i32, i32) {
    %c0_i32 = arith.constant 0 : i32
    %c0_i32_0 = arith.constant 0 : i32
    %c0_i32_1 = arith.constant 0 : i32
    return %c0_i32, %c0_i32_0 : i32, i32
  }
  func.func @transform_3(%arg0: i32, %arg1: i32) -> (i32, i32) {
    %c0_i32 = arith.constant 0 : i32
    %c0_i32_0 = arith.constant 0 : i32
    %c0_i32_1 = arith.constant 0 : i32
    return %c0_i32, %c0_i32_0 : i32, i32
  }
  func.func @transform_4(%arg0: i32, %arg1: i32) -> (i32, i32) {
    %c0_i32 = arith.constant 0 : i32
    %c0_i32_0 = arith.constant 0 : i32
    %c0_i32_1 = arith.constant 0 : i32
    return %c0_i32, %c0_i32_0 : i32, i32
  }
  func.func @transform_5(%arg0: i32, %arg1: i32) -> (i32, i32) {
    %c0_i32 = arith.constant 0 : i32
    %c0_i32_0 = arith.constant 0 : i32
    %c0_i32_1 = arith.constant 0 : i32
    return %c0_i32, %c0_i32_0 : i32, i32
  }
  func.func @transform_6(%arg0: i32, %arg1: i32) -> (i32, i32) {
    %c0_i32 = arith.constant 0 : i32
    %c0_i32_0 = arith.constant 0 : i32
    return %arg0, %c0_i32 : i32, i32
  }
  func.func @transform_7(%arg0: i32, %arg1: i32) -> (i32, i32) {
    %c0_i32 = arith.constant 0 : i32
    %c0_i32_0 = arith.constant 0 : i32
    return %arg0, %c0_i32 : i32, i32
  }
  func.func @transform_8(%arg0: i32, %arg1: i32) -> (i32, i32) {
    %c0_i32 = arith.constant 0 : i32
    %c0_i32_0 = arith.constant 0 : i32
    return %arg0, %c0_i32 : i32, i32
  }
}

</mosaic_0001>

<llo_original>
// kernel: tpu_custom_call.1
$region0: #{tpu_custom_call.1}
  #allocation0 [shape = 'u32[]', space=smem, size = 0x4, offset = 0x4, fixed_abs, tag = 'smem constant byte address 0x4 - core index']
  #allocation1 [shape = 'u32[144,128]{1,0:T(1,128)}', space=vmem, size = 0x12000, scoped, tag = 'internal scratch']
  #allocation2 [shape = 'bf16[8,8,512]{2,1,0:T(8,128)(2,1)}', space=vmem, size = 0x10000, scoped, tag = 'scratch operand']
  #allocation3 [shape = 'f32[8,128]{1,0:T(8,128)}', space=vmem, size = 0x1000, scoped, tag = 'scratch operand']
  #allocation4 [shape = 'f32[8,128]{1,0:T(8,128)}', space=vmem, size = 0x1000, scoped, tag = 'scratch operand']
  %s0 = inlined_call_operand.hbm [shape: bf16[8,8,128], index: 0, kind: input, shape index: {}]
  %s1 = inlined_call_operand.hbm [shape: bf16[128,512], index: 1, kind: input, shape index: {}]
  %s2 = inlined_call_operand.hbm [shape: bf16[128,512], index: 2, kind: input, shape index: {}]
  %s3 = inlined_call_operand.vmem [shape: f32[1,512], index: 3, kind: input, shape index: {}]
  %s4 = inlined_call_operand.hbm [shape: bf16[128,128], index: 4, kind: input, shape index: {}]
  %s5 = inlined_call_operand.vmem [shape: f32[1,128], index: 5, kind: input, shape index: {}]
  %s6 = inlined_call_operand.hbm [shape: f32[8,128], index: 6, kind: output, shape index: {0}]
  %s7 = inlined_call_operand.hbm [shape: f32[8,128], index: 7, kind: output, shape index: {1}]
  %s8 = inlined_call_operand.hbm [shape: f32[8,128], index: 8, kind: output, shape index: {2}]
  %9 = xla_tuple %s6, %s7, %s8
  %s10 = sld [smem:[#allocation0]]
  $region74: #{tpu_custom_call.1} parent=0
    _
  %s12 = ssub.s32 1, %s10
  %s13 = scalar_select 0, %s12, %s10
  $region1: #{tpu_custom_call.1} parent=0
    #allocation5 [shape = 'u8[16384]{0}', space=vmem, size = 0x4000, scoped, tag = 'input window, operand 0, single buffered']
    #allocation6 [shape = 's32[1]{0}', space=sflag, size = 0x4, scoped, tag = 'scoped memory for tpu_custom_call.1']
    #allocation7 [shape = 's32[1]{0}', space=sflag, size = 0x4, scoped, tag = 'scoped memory for tpu_custom_call.1']
    #allocation8 [shape = 'u8[131072]{0}', space=vmem, size = 0x20000, scoped, tag = 'input window, operand 1, single buffered']
    #allocation9 [shape = 's32[1]{0}', space=sflag, size = 0x4, scoped, tag = 'scoped memory for tpu_custom_call.1']
    #allocation10 [shape = 'u8[131072]{0}', space=vmem, size = 0x20000, scoped, tag = 'input window, operand 2, single buffered']
    #allocation11 [shape = 'u8[32768]{0}', space=vmem, size = 0x8000, scoped, tag = 'input window, operand 4, single buffered']
    #allocation12 [shape = 's32[1]{0}', space=sflag, size = 0x4, scoped, tag = 'scoped memory for tpu_custom_call.1']
    #allocation13 [shape = 'u8[4096]{0}', space=vmem, size = 0x1000, scoped, tag = 'output window, operand 0, single buffered']
    #allocation14 [shape = 'u8[4096]{0}', space=vmem, size = 0x1000, scoped, tag = 'output window, operand 1, single buffered']
    #allocation15 [shape = 's32[1]{0}', space=sflag, size = 0x4, scoped, tag = 'scoped memory for tpu_custom_call.1']
    #allocation16 [shape = 'u8[4096]{0}', space=vmem, size = 0x1000, scoped, tag = 'output window, operand 2, single buffered']
    %14 = vsyncpa [#allocation6], 0
    %15 = vsyncpa [#allocation9], 0
    %16 = vsyncpa [#allocation12], 0
    %17 = vsyncpa [#allocation7], 0
    %18 = vsyncpa [#allocation15], 0
    // Predicated region
    $region2: #{tpu_custom_call.1} parent=1 // pred_check
      _
    $region3: #{tpu_custom_call.1} parent=1 // pred_check_branch
      %20 = sbr.rel (0) target = $region5
    $region4: #{tpu_custom_call.1} parent=1 // pred_region
      %s22 = ssub.s32 512, 512
      %23 = vsyncadd [#allocation6], %s22
      %s24 = sshll.u32 [#allocation5], 4
      %s25 = int_to_ptr.vmem [resolvable:$true] %s24
      %30 = dma.hbm_to_vmem [thread:$0]  %s0, 512, %s25, [#allocation6], 64, 64, 4
    $region5: #{tpu_custom_call.1} parent=1 // pred_fallthru
      _
    // Predicated region
    $region6: #{tpu_custom_call.1} parent=1 // pred_check
      _
    $region7: #{tpu_custom_call.1} parent=1 // pred_check_branch
      %32 = sbr.rel (0) target = $region9
    $region8: #{tpu_custom_call.1} parent=1 // pred_region
      %s34 = ssub.s32 4096, 4096
      %35 = vsyncadd [#allocation9], %s34
      %s36 = sshll.u32 [#allocation8], 4
      %s37 = int_to_ptr.vmem [resolvable:$true] %s36
      %42 = dma.hbm_to_vmem [thread:$0]  %s1, 4096, %s37, [#allocation9], 256, 256, 16
    $region9: #{tpu_custom_call.1} parent=1 // pred_fallthru
      _
    // Predicated region
    $region10: #{tpu_custom_call.1} parent=1 // pred_check
      _
    $region11: #{tpu_custom_call.1} parent=1 // pred_check_branch
      %44 = sbr.rel (0) target = $region13
    $region12: #{tpu_custom_call.1} parent=1 // pred_region
      %s46 = ssub.s32 4096, 4096
      %47 = vsyncadd [#allocation9], %s46
      %s48 = sshll.u32 [#allocation10], 4
      %s49 = int_to_ptr.vmem [resolvable:$true] %s48
      %54 = dma.hbm_to_vmem [thread:$0]  %s2, 4096, %s49, [#allocation9], 256, 256, 16
    $region13: #{tpu_custom_call.1} parent=1 // pred_fallthru
      _
    // Predicated region
    $region14: #{tpu_custom_call.1} parent=1 // pred_check
      _
    $region15: #{tpu_custom_call.1} parent=1 // pred_check_branch
      %56 = sbr.rel (0) target = $region17
    $region16: #{tpu_custom_call.1} parent=1 // pred_region
      _
    $region17: #{tpu_custom_call.1} parent=1 // pred_fallthru
      _
    // Predicated region
    $region18: #{tpu_custom_call.1} parent=1 // pred_check
      _
    $region19: #{tpu_custom_call.1} parent=1 // pred_check_branch
      %58 = sbr.rel (0) target = $region21
    $region20: #{tpu_custom_call.1} parent=1 // pred_region
      %s60 = ssub.s32 1024, 1024
      %61 = vsyncadd [#allocation12], %s60
      %s62 = sshll.u32 [#allocation11], 4
      %s63 = int_to_ptr.vmem [resolvable:$true] %s62
      %68 = dma.hbm_to_vmem [thread:$0]  %s4, 1024, %s63, [#allocation12], 64, 64, 4
    $region21: #{tpu_custom_call.1} parent=1 // pred_fallthru
      _
    // Predicated region
    $region22: #{tpu_custom_call.1} parent=1 // pred_check
      _
    $region23: #{tpu_custom_call.1} parent=1 // pred_check_branch
      %70 = sbr.rel (0) target = $region25
    $region24: #{tpu_custom_call.1} parent=1 // pred_region
      _
    $region25: #{tpu_custom_call.1} parent=1 // pred_fallthru
      _
    // Predicated region
    $region26: #{tpu_custom_call.1} parent=1 // pred_check
      _
    $region27: #{tpu_custom_call.1} parent=1 // pred_check_branch
      %72 = sbr.rel (0) target = $region29
    $region28: #{tpu_custom_call.1} parent=1 // pred_region
      %73 = dma.done [#allocation6], 512
    $region29: #{tpu_custom_call.1} parent=1 // pred_fallthru
      _
    // Predicated region
    $region30: #{tpu_custom_call.1} parent=1 // pred_check
      _
    $region31: #{tpu_custom_call.1} parent=1 // pred_check_branch
      %75 = sbr.rel (0) target = $region33
    $region32: #{tpu_custom_call.1} parent=1 // pred_region
      %76 = dma.done [#allocation9], 4096
    $region33: #{tpu_custom_call.1} parent=1 // pred_fallthru
      _
    // Predicated region
    $region34: #{tpu_custom_call.1} parent=1 // pred_check
      _
    $region35: #{tpu_custom_call.1} parent=1 // pred_check_branch
      %78 = sbr.rel (0) target = $region37
    $region36: #{tpu_custom_call.1} parent=1 // pred_region
      %79 = dma.done [#allocation9], 4096
    $region37: #{tpu_custom_call.1} parent=1 // pred_fallthru
      _
    // Predicated region
    $region38: #{tpu_custom_call.1} parent=1 // pred_check
      _
    $region39: #{tpu_custom_call.1} parent=1 // pred_check_branch
      %81 = sbr.rel (0) target = $region41
    $region40: #{tpu_custom_call.1} parent=1 // pred_region
      %82 = dma.done [#allocation12], 1024
    $region41: #{tpu_custom_call.1} parent=1 // pred_fallthru
      _
    %p84 = scmp.eq.s32.totalorder 0, 0
    // Predicated region
    $region42: #{tpu_custom_call.1} parent=1 // pred_check
      %p85 = pneg %p84
    $region43: #{tpu_custom_call.1} parent=1 // pred_check_branch
      %87 = sbr.rel (%p85) target = $region45
    $region44: #{tpu_custom_call.1} parent=1 // pred_region
      %88 = vst [vmem:[#allocation3] sm:$0xff] 0.0
      %89 = vst [vmem:[#allocation4] sm:$0xff] 0.0
    $region45: #{tpu_custom_call.1} parent=1 // pred_fallthru
      _
    %v90 = vld [vmem:[#allocation5] sm:$0xf]
    %v91 = vld [vmem:[#allocation5 + $0x4] sm:$0xf]
    %v92 = vld [vmem:[#allocation5 + $0x8] sm:$0xf]
    %v93 = vld [vmem:[#allocation5 + $0xc] sm:$0xf]
    %v94 = vld [vmem:[#allocation5 + $0x10] sm:$0xf]
    %v95 = vld [vmem:[#allocation5 + $0x14] sm:$0xf]
    %v96 = vld [vmem:[#allocation5 + $0x18] sm:$0xf]
    %v97 = vld [vmem:[#allocation5 + $0x1c] sm:$0xf]
    %v98 = vld [vmem:[#allocation8] sm:$0xff]
    %v99 = vld [vmem:[#allocation8 + $0x8] sm:$0xff]
    %v100 = vld [vmem:[#allocation8 + $0x10] sm:$0xff]
    %v101 = vld [vmem:[#allocation8 + $0x18] sm:$0xff]
    %v102 = vld [vmem:[#allocation8 + $0x20] sm:$0xff]
    %v103 = vld [vmem:[#allocation8 + $0x28] sm:$0xff]
    %v104 = vld [vmem:[#allocation8 + $0x30] sm:$0xff]
    %v105 = vld [vmem:[#allocation8 + $0x38] sm:$0xff]
    %v106 = vld [vmem:[#allocation8 + $0x40] sm:$0xff]
    %v107 = vld [vmem:[#allocation8 + $0x48] sm:$0xff]
    %v108 = vld [vmem:[#allocation8 + $0x50] sm:$0xff]
    %v109 = vld [vmem:[#allocation8 + $0x58] sm:$0xff]
    %v110 = vld [vmem:[#allocation8 + $0x60] sm:$0xff]
    %v111 = vld [vmem:[#allocation8 + $0x68] sm:$0xff]
    %v112 = vld [vmem:[#allocation8 + $0x70] sm:$0xff]
    %v113 = vld [vmem:[#allocation8 + $0x78] sm:$0xff]
    %v114 = vld [vmem:[#allocation8 + $0x80] sm:$0xff]
    %v115 = vld [vmem:[#allocation8 + $0x88] sm:$0xff]
    %v116 = vld [vmem:[#allocation8 + $0x90] sm:$0xff]
    %v117 = vld [vmem:[#allocation8 + $0x98] sm:$0xff]
    %v118 = vld [vmem:[#allocation8 + $0xa0] sm:$0xff]
    %v119 = vld [vmem:[#allocation8 + $0xa8] sm:$0xff]
    %v120 = vld [vmem:[#allocation8 + $0xb0] sm:$0xff]
    %v121 = vld [vmem:[#allocation8 + $0xb8] sm:$0xff]
    %v122 = vld [vmem:[#allocation8 + $0xc0] sm:$0xff]
    %v123 = vld [vmem:[#allocation8 + $0xc8] sm:$0xff]
    %v124 = vld [vmem:[#allocation8 + $0xd0] sm:$0xff]
    %v125 = vld [vmem:[#allocation8 + $0xd8] sm:$0xff]
    %v126 = vld [vmem:[#allocation8 + $0xe0] sm:$0xff]
    %v127 = vld [vmem:[#allocation8 + $0xe8] sm:$0xff]
    %v128 = vld [vmem:[#allocation8 + $0xf0] sm:$0xff]
    %v129 = vld [vmem:[#allocation8 + $0xf8] sm:$0xff]
    %v130 = vld [vmem:[%s3] sm:$0xf]
    %v132 = vlaneseq
    %v133 = vshrl.u32 %v132, 7
    %v134 = vsub.s32 0, %v133
    %v135 = vrot.slane %v130, %v134
    %v136 = vlaneseq
    %v137 = vshrl.u32 %v136, 7
    %v138 = vsub.s32 1, %v137
    %v139 = vrot.slane %v130, %v138
    %v140 = vlaneseq
    %v141 = vshrl.u32 %v140, 7
    %v142 = vsub.s32 2, %v141
    %v143 = vrot.slane %v130, %v142
    %v144 = vlaneseq
    %v145 = vshrl.u32 %v144, 7
    %v146 = vsub.s32 3, %v145
    %v147 = vrot.slane %v130, %v146
    %v160 = vunpack.c.l.b16 %v90
    %v161 = vunpack.c.l.b16 %v91
    %v162 = vunpack.c.l.b16 %v92
    %v163 = vunpack.c.l.b16 %v93
    %v164 = vunpack.c.l.b16 %v94
    %v165 = vunpack.c.l.b16 %v95
    %v166 = vunpack.c.l.b16 %v96
    %v167 = vunpack.c.l.b16 %v97
    %v168 = vpack.c.b16 %v161, %v160
    %v169 = vpack.c.b16 %v163, %v162
    %v170 = vpack.c.b16 %v165, %v164
    %v171 = vpack.c.b16 %v167, %v166
    %v208 = vunpack.c.l.b16 %v98
    %v209 = vunpack.c.h.b16 %v98
    %v210 = vunpack.c.l.b16 %v99
    %v211 = vunpack.c.h.b16 %v99
    %v212 = vunpack.c.l.b16 %v100
    %v213 = vunpack.c.h.b16 %v100
    %v214 = vunpack.c.l.b16 %v101
    %v215 = vunpack.c.h.b16 %v101
    %v216 = vunpack.c.l.b16 %v102
    %v217 = vunpack.c.h.b16 %v102
    %v218 = vunpack.c.l.b16 %v103
    %v219 = vunpack.c.h.b16 %v103
    %v220 = vunpack.c.l.b16 %v104
    %v221 = vunpack.c.h.b16 %v104
    %v222 = vunpack.c.l.b16 %v105
    %v223 = vunpack.c.h.b16 %v105
    %v224 = vunpack.c.l.b16 %v106
    %v225 = vunpack.c.h.b16 %v106
    %v226 = vunpack.c.l.b16 %v107
    %v227 = vunpack.c.h.b16 %v107
    %v228 = vunpack.c.l.b16 %v108
    %v229 = vunpack.c.h.b16 %v108
    %v230 = vunpack.c.l.b16 %v109
    %v231 = vunpack.c.h.b16 %v109
    %v232 = vunpack.c.l.b16 %v110
    %v233 = vunpack.c.h.b16 %v110
    %v234 = vunpack.c.l.b16 %v111
    %v235 = vunpack.c.h.b16 %v111
    %v236 = vunpack.c.l.b16 %v112
    %v237 = vunpack.c.h.b16 %v112
    %v238 = vunpack.c.l.b16 %v113
    %v239 = vunpack.c.h.b16 %v113
    %v240 = vunpack.c.l.b16 %v114
    %v241 = vunpack.c.h.b16 %v114
    %v242 = vunpack.c.l.b16 %v115
    %v243 = vunpack.c.h.b16 %v115
    %v244 = vunpack.c.l.b16 %v116
    %v245 = vunpack.c.h.b16 %v116
    %v246 = vunpack.c.l.b16 %v117
    %v247 = vunpack.c.h.b16 %v117
    %v248 = vunpack.c.l.b16 %v118
    %v249 = vunpack.c.h.b16 %v118
    %v250 = vunpack.c.l.b16 %v119
    %v251 = vunpack.c.h.b16 %v119
    %v252 = vunpack.c.l.b16 %v120
    %v253 = vunpack.c.h.b16 %v120
    %v254 = vunpack.c.l.b16 %v121
    %v255 = vunpack.c.h.b16 %v121
    %v256 = vunpack.c.l.b16 %v122
    %v257 = vunpack.c.h.b16 %v122
    %v258 = vunpack.c.l.b16 %v123
    %v259 = vunpack.c.h.b16 %v123
    %v260 = vunpack.c.l.b16 %v124
    %v261 = vunpack.c.h.b16 %v124
    %v262 = vunpack.c.l.b16 %v125
    %v263 = vunpack.c.h.b16 %v125
    %v264 = vunpack.c.l.b16 %v126
    %v265 = vunpack.c.h.b16 %v126
    %v266 = vunpack.c.l.b16 %v127
    %v267 = vunpack.c.h.b16 %v127
    %v268 = vunpack.c.l.b16 %v128
    %v269 = vunpack.c.h.b16 %v128
    %v270 = vunpack.c.l.b16 %v129
    %v271 = vunpack.c.h.b16 %v129
    %v272 = vpack.c.b16 %v212, %v208
    %v273 = vpack.c.b16 %v213, %v209
    %v274 = vpack.c.b16 %v214, %v210
    %v275 = vpack.c.b16 %v215, %v211
    %v276 = vpack.c.b16 %v220, %v216
    %v277 = vpack.c.b16 %v221, %v217
    %v278 = vpack.c.b16 %v222, %v218
    %v279 = vpack.c.b16 %v223, %v219
    %v280 = vpack.c.b16 %v228, %v224
    %v281 = vpack.c.b16 %v229, %v225
    %v282 = vpack.c.b16 %v230, %v226
    %v283 = vpack.c.b16 %v231, %v227
    %v284 = vpack.c.b16 %v236, %v232
    %v285 = vpack.c.b16 %v237, %v233
    %v286 = vpack.c.b16 %v238, %v234
    %v287 = vpack.c.b16 %v239, %v235
    %v288 = vpack.c.b16 %v244, %v240
    %v289 = vpack.c.b16 %v245, %v241
    %v290 = vpack.c.b16 %v246, %v242
    %v291 = vpack.c.b16 %v247, %v243
    %v292 = vpack.c.b16 %v252, %v248
    %v293 = vpack.c.b16 %v253, %v249
    %v294 = vpack.c.b16 %v254, %v250
    %v295 = vpack.c.b16 %v255, %v251
    %v296 = vpack.c.b16 %v260, %v256
    %v297 = vpack.c.b16 %v261, %v257
    %v298 = vpack.c.b16 %v262, %v258
    %v299 = vpack.c.b16 %v263, %v259
    %v300 = vpack.c.b16 %v268, %v264
    %v301 = vpack.c.b16 %v269, %v265
    %v302 = vpack.c.b16 %v270, %v266
    %v303 = vpack.c.b16 %v271, %v267
    %336 = vmatprep.subr.bf16.mxu0 %v301
    %337 = vmatpush1.bf16.msra.mxu0 %v300
    %338 = vmatprep.subr.bf16.mxu0 %v297
    %339 = vmatpush1.bf16.msra.mxu0 %v296
    %340 = vmatprep.subr.bf16.mxu0 %v293
    %341 = vmatpush1.bf16.msra.mxu0 %v292
    %342 = vmatprep.subr.bf16.mxu0 %v289
    %343 = vmatpush1.bf16.msra.mxu0 %v288
    %344 = vmatprep.subr.bf16.mxu0 %v285
    %345 = vmatpush1.bf16.msra.mxu0 %v284
    %346 = vmatprep.subr.bf16.mxu0 %v281
    %347 = vmatpush1.bf16.msra.mxu0 %v280
    %348 = vmatprep.subr.bf16.mxu0 %v277
    %349 = vmatpush1.bf16.msra.mxu0 %v276
    %350 = vmatprep.subr.bf16.mxu0 %v273
    %351 = vmatpush1.bf16.msra.mxu0 %v272
    %352 = vmatprep.subr.bf16.mxu0 0
    %353 = vmatpush2.bf16.msra.mxu0 0
    %354 = vmatprep.subr.bf16.mxu0 0
    %355 = vmatpush2.bf16.msra.mxu0 0
    %356 = vmatprep.subr.bf16.mxu0 0
    %357 = vmatpush2.bf16.msra.mxu0 0
    %358 = vmatprep.subr.bf16.mxu0 0
    %359 = vmatpush2.bf16.msra.mxu0 0
    %360 = vmatprep.subr.bf16.mxu0 0
    %361 = vmatpush2.bf16.msra.mxu0 0
    %362 = vmatprep.subr.bf16.mxu0 0
    %363 = vmatpush2.bf16.msra.mxu0 0
    %364 = vmatprep.subr.bf16.mxu0 0
    %365 = vmatpush2.bf16.msra.mxu0 0
    %366 = vmatprep.subr.bf16.mxu0 0
    %367 = vmatpush2.bf16.msra.mxu0 0
    %368 = vmatprep.mubr.bf16.mxu0 0
    %369 = vmatmul.mubr.bf16.gmra.mxu0 %v168
    %v370 = vpop.f32.mrf.mxu0
    %v371 = vadd.f32 %v135, %v370
    %v372 = vpop.f32.mrf.mxu0
    %v373 = vadd.f32 %v139, %v372
    %v374 = vpop.f32.mrf.mxu0
    %v375 = vadd.f32 %v135, %v374
    %v376 = vpop.f32.mrf.mxu0
    %v377 = vadd.f32 %v139, %v376
    %378 = vmatprep.mubr.bf16.mxu0 0
    %379 = vmatmul.mubr.bf16.gmra.mxu0 %v169
    %v380 = vpop.f32.mrf.mxu0
    %v381 = vadd.f32 %v135, %v380
    %v382 = vpop.f32.mrf.mxu0
    %v383 = vadd.f32 %v139, %v382
    %v384 = vpop.f32.mrf.mxu0
    %v385 = vadd.f32 %v135, %v384
    %v386 = vpop.f32.mrf.mxu0
    %v387 = vadd.f32 %v139, %v386
    %388 = vmatprep.mubr.bf16.mxu0 0
    %389 = vmatmul.mubr.bf16.gmra.mxu0 %v170
    %v390 = vpop.f32.mrf.mxu0
    %v391 = vadd.f32 %v135, %v390
    %v392 = vpop.f32.mrf.mxu0
    %v393 = vadd.f32 %v139, %v392
    %v394 = vpop.f32.mrf.mxu0
    %v395 = vadd.f32 %v135, %v394
    %v396 = vpop.f32.mrf.mxu0
    %v397 = vadd.f32 %v139, %v396
    %398 = vmatprep.mubr.bf16.mxu0 0
    %399 = vmatmul.mubr.bf16.gmra.mxu0 %v171
    %v400 = vpop.f32.mrf.mxu0
    %v401 = vadd.f32 %v135, %v400
    %v402 = vpop.f32.mrf.mxu0
    %v403 = vadd.f32 %v139, %v402
    %v404 = vpop.f32.mrf.mxu0
    %v405 = vadd.f32 %v135, %v404
    %v406 = vpop.f32.mrf.mxu0
    %v407 = vadd.f32 %v139, %v406
    %408 = vdwg.mxu0
    %409 = vmatprep.subr.bf16.mxu0 %v303
    %410 = vmatpush1.bf16.msra.mxu0 %v302
    %411 = vmatprep.subr.bf16.mxu0 %v299
    %412 = vmatpush1.bf16.msra.mxu0 %v298
    %413 = vmatprep.subr.bf16.mxu0 %v295
    %414 = vmatpush1.bf16.msra.mxu0 %v294
    %415 = vmatprep.subr.bf16.mxu0 %v291
    %416 = vmatpush1.bf16.msra.mxu0 %v290
    %417 = vmatprep.subr.bf16.mxu0 %v287
    %418 = vmatpush1.bf16.msra.mxu0 %v286
    %419 = vmatprep.subr.bf16.mxu0 %v283
    %420 = vmatpush1.bf16.msra.mxu0 %v282
    %421 = vmatprep.subr.bf16.mxu0 %v279
    %422 = vmatpush1.bf16.msra.mxu0 %v278
    %423 = vmatprep.subr.bf16.mxu0 %v275
    %424 = vmatpush1.bf16.msra.mxu0 %v274
    %425 = vmatprep.subr.bf16.mxu0 0
    %426 = vmatpush2.bf16.msra.mxu0 0
    %427 = vmatprep.subr.bf16.mxu0 0
    %428 = vmatpush2.bf16.msra.mxu0 0
    %429 = vmatprep.subr.bf16.mxu0 0
    %430 = vmatpush2.bf16.msra.mxu0 0
    %431 = vmatprep.subr.bf16.mxu0 0
    %432 = vmatpush2.bf16.msra.mxu0 0
    %433 = vmatprep.subr.bf16.mxu0 0
    %434 = vmatpush2.bf16.msra.mxu0 0
    %435 = vmatprep.subr.bf16.mxu0 0
    %436 = vmatpush2.bf16.msra.mxu0 0
    %437 = vmatprep.subr.bf16.mxu0 0
    %438 = vmatpush2.bf16.msra.mxu0 0
    %439 = vmatprep.subr.bf16.mxu0 0
    %440 = vmatpush2.bf16.msra.mxu0 0
    %441 = vmatprep.mubr.bf16.mxu0 0
    %442 = vmatmul.mubr.bf16.gmra.mxu0 %v168
    %v443 = vpop.f32.mrf.mxu0
    %v444 = vadd.f32 %v143, %v443
    %v445 = vpop.f32.mrf.mxu0
    %v446 = vadd.f32 %v147, %v445
    %v447 = vpop.f32.mrf.mxu0
    %v448 = vadd.f32 %v143, %v447
    %v449 = vpop.f32.mrf.mxu0
    %v450 = vadd.f32 %v147, %v449
    %451 = vmatprep.mubr.bf16.mxu0 0
    %452 = vmatmul.mubr.bf16.gmra.mxu0 %v169
    %v453 = vpop.f32.mrf.mxu0
    %v454 = vadd.f32 %v143, %v453
    %v455 = vpop.f32.mrf.mxu0
    %v456 = vadd.f32 %v147, %v455
    %v457 = vpop.f32.mrf.mxu0
    %v458 = vadd.f32 %v143, %v457
    %v459 = vpop.f32.mrf.mxu0
    %v460 = vadd.f32 %v147, %v459
    %461 = vmatprep.mubr.bf16.mxu0 0
    %462 = vmatmul.mubr.bf16.gmra.mxu0 %v170
    %v463 = vpop.f32.mrf.mxu0
    %v464 = vadd.f32 %v143, %v463
    %v465 = vpop.f32.mrf.mxu0
    %v466 = vadd.f32 %v147, %v465
    %v467 = vpop.f32.mrf.mxu0
    %v468 = vadd.f32 %v143, %v467
    %v469 = vpop.f32.mrf.mxu0
    %v470 = vadd.f32 %v147, %v469
    %471 = vmatprep.mubr.bf16.mxu0 0
    %472 = vmatmul.mubr.bf16.gmra.mxu0 %v171
    %v473 = vpop.f32.mrf.mxu0
    %v474 = vadd.f32 %v143, %v473
    %v475 = vpop.f32.mrf.mxu0
    %v476 = vadd.f32 %v147, %v475
    %v477 = vpop.f32.mrf.mxu0
    %v478 = vadd.f32 %v143, %v477
    %v479 = vpop.f32.mrf.mxu0
    %v480 = vadd.f32 %v147, %v479
    %481 = vdwg.mxu0
    %v482 = vpack.c.bf16 %v371, %v371
    %v483 = vpack.c.bf16 %v373, %v373
    %v484 = vpack.c.bf16 %v444, %v444
    %v485 = vpack.c.bf16 %v446, %v446
    %v486 = vpack.c.bf16 %v375, %v375
    %v487 = vpack.c.bf16 %v377, %v377
    %v488 = vpack.c.bf16 %v448, %v448
    %v489 = vpack.c.bf16 %v450, %v450
    %v490 = vpack.c.bf16 %v381, %v381
    %v491 = vpack.c.bf16 %v383, %v383
    %v492 = vpack.c.bf16 %v454, %v454
    %v493 = vpack.c.bf16 %v456, %v456
    %v494 = vpack.c.bf16 %v385, %v385
    %v495 = vpack.c.bf16 %v387, %v387
    %v496 = vpack.c.bf16 %v458, %v458
    %v497 = vpack.c.bf16 %v460, %v460
    %v498 = vpack.c.bf16 %v391, %v391
    %v499 = vpack.c.bf16 %v393, %v393
    %v500 = vpack.c.bf16 %v464, %v464
    %v501 = vpack.c.bf16 %v466, %v466
    %v502 = vpack.c.bf16 %v395, %v395
    %v503 = vpack.c.bf16 %v397, %v397
    %v504 = vpack.c.bf16 %v468, %v468
    %v505 = vpack.c.bf16 %v470, %v470
    %v506 = vpack.c.bf16 %v401, %v401
    %v507 = vpack.c.bf16 %v403, %v403
    %v508 = vpack.c.bf16 %v474, %v474
    %v509 = vpack.c.bf16 %v476, %v476
    %v510 = vpack.c.bf16 %v405, %v405
    %v511 = vpack.c.bf16 %v407, %v407
    %v512 = vpack.c.bf16 %v478, %v478
    %v513 = vpack.c.bf16 %v480, %v480
    %v546 = vunpack.c.l.b16 %v482
    %v547 = vunpack.c.l.b16 %v483
    %v548 = vunpack.c.l.b16 %v484
    %v549 = vunpack.c.l.b16 %v485
    %v550 = vunpack.c.l.b16 %v486
    %v551 = vunpack.c.l.b16 %v487
    %v552 = vunpack.c.l.b16 %v488
    %v553 = vunpack.c.l.b16 %v489
    %v554 = vunpack.c.l.b16 %v490
    %v555 = vunpack.c.l.b16 %v491
    %v556 = vunpack.c.l.b16 %v492
    %v557 = vunpack.c.l.b16 %v493
    %v558 = vunpack.c.l.b16 %v494
    %v559 = vunpack.c.l.b16 %v495
    %v560 = vunpack.c.l.b16 %v496
    %v561 = vunpack.c.l.b16 %v497
    %v562 = vunpack.c.l.b16 %v498
    %v563 = vunpack.c.l.b16 %v499
    %v564 = vunpack.c.l.b16 %v500
    %v565 = vunpack.c.l.b16 %v501
    %v566 = vunpack.c.l.b16 %v502
    %v567 = vunpack.c.l.b16 %v503
    %v568 = vunpack.c.l.b16 %v504
    %v569 = vunpack.c.l.b16 %v505
    %v570 = vunpack.c.l.b16 %v506
    %v571 = vunpack.c.l.b16 %v507
    %v572 = vunpack.c.l.b16 %v508
    %v573 = vunpack.c.l.b16 %v509
    %v574 = vunpack.c.l.b16 %v510
    %v575 = vunpack.c.l.b16 %v511
    %v576 = vunpack.c.l.b16 %v512
    %v577 = vunpack.c.l.b16 %v513
    %v578 = vpack.c.b16 %v547, %v546
    %v579 = vpack.c.b16 %v549, %v548
    %v580 = vpack.c.b16 %v551, %v550
    %v581 = vpack.c.b16 %v553, %v552
    %v582 = vpack.c.b16 %v555, %v554
    %v583 = vpack.c.b16 %v557, %v556
    %v584 = vpack.c.b16 %v559, %v558
    %v585 = vpack.c.b16 %v561, %v560
    %v586 = vpack.c.b16 %v563, %v562
    %v587 = vpack.c.b16 %v565, %v564
    %v588 = vpack.c.b16 %v567, %v566
    %v589 = vpack.c.b16 %v569, %v568
    %v590 = vpack.c.b16 %v571, %v570
    %v591 = vpack.c.b16 %v573, %v572
    %v592 = vpack.c.b16 %v575, %v574
    %v593 = vpack.c.b16 %v577, %v576
    %610 = vst [vmem:[#allocation2] sm:$0xff] %v578
    %611 = vst [vmem:[#allocation2 + $0x8] sm:$0xff] %v579
    %612 = vst [vmem:[#allocation2 + $0x10] sm:$0xff] %v580
    %613 = vst [vmem:[#allocation2 + $0x18] sm:$0xff] %v581
    %614 = vst [vmem:[#allocation2 + $0x20] sm:$0xff] %v582
    %615 = vst [vmem:[#allocation2 + $0x28] sm:$0xff] %v583
    %616 = vst [vmem:[#allocation2 + $0x30] sm:$0xff] %v584
    %617 = vst [vmem:[#allocation2 + $0x38] sm:$0xff] %v585
    %618 = vst [vmem:[#allocation2 + $0x40] sm:$0xff] %v586
    %619 = vst [vmem:[#allocation2 + $0x48] sm:$0xff] %v587
    %620 = vst [vmem:[#allocation2 + $0x50] sm:$0xff] %v588
    %621 = vst [vmem:[#allocation2 + $0x58] sm:$0xff] %v589
    %622 = vst [vmem:[#allocation2 + $0x60] sm:$0xff] %v590
    %623 = vst [vmem:[#allocation2 + $0x68] sm:$0xff] %v591
    %624 = vst [vmem:[#allocation2 + $0x70] sm:$0xff] %v592
    %625 = vst [vmem:[#allocation2 + $0x78] sm:$0xff] %v593
    %v626 = vld [vmem:[#allocation3] sm:$0xff]
    %v627 = vld [vmem:[#allocation4] sm:$0xff]
    %v628 = vld [vmem:[#allocation2] sm:$0xff]
    %v629 = vld [vmem:[#allocation2 + $0x8] sm:$0xff]
    %v630 = vunpack.c.l.bf16 %v628
    %v631 = vunpack.c.h.bf16 %v628
    %v632 = vunpack.c.l.bf16 %v629
    %v633 = vunpack.c.h.bf16 %v629
    %v634 = vpack.c.bf16 %v626, %v626
    %v635 = vld [vmem:[#allocation10] sm:$0xff]
    %v636 = vld [vmem:[#allocation10 + $0x8] sm:$0xff]
    %v637 = vld [vmem:[#allocation10 + $0x10] sm:$0xff]
    %v638 = vld [vmem:[#allocation10 + $0x18] sm:$0xff]
    %v639 = vld [vmem:[#allocation10 + $0x20] sm:$0xff]
    %v640 = vld [vmem:[#allocation10 + $0x28] sm:$0xff]
    %v641 = vld [vmem:[#allocation10 + $0x30] sm:$0xff]
    %v642 = vld [vmem:[#allocation10 + $0x38] sm:$0xff]
    %v643 = vld [vmem:[#allocation10 + $0x40] sm:$0xff]
    %v644 = vld [vmem:[#allocation10 + $0x48] sm:$0xff]
    %v645 = vld [vmem:[#allocation10 + $0x50] sm:$0xff]
    %v646 = vld [vmem:[#allocation10 + $0x58] sm:$0xff]
    %v647 = vld [vmem:[#allocation10 + $0x60] sm:$0xff]
    %v648 = vld [vmem:[#allocation10 + $0x68] sm:$0xff]
    %v649 = vld [vmem:[#allocation10 + $0x70] sm:$0xff]
    %v650 = vld [vmem:[#allocation10 + $0x78] sm:$0xff]
    %v651 = vld [vmem:[#allocation10 + $0x80] sm:$0xff]
    %v652 = vld [vmem:[#allocation10 + $0x88] sm:$0xff]
    %v653 = vld [vmem:[#allocation10 + $0x90] sm:$0xff]
    %v654 = vld [vmem:[#allocation10 + $0x98] sm:$0xff]
    %v655 = vld [vmem:[#allocation10 + $0xa0] sm:$0xff]
    %v656 = vld [vmem:[#allocation10 + $0xa8] sm:$0xff]
    %v657 = vld [vmem:[#allocation10 + $0xb0] sm:$0xff]
    %v658 = vld [vmem:[#allocation10 + $0xb8] sm:$0xff]
    %v659 = vld [vmem:[#allocation10 + $0xc0] sm:$0xff]
    %v660 = vld [vmem:[#allocation10 + $0xc8] sm:$0xff]
    %v661 = vld [vmem:[#allocation10 + $0xd0] sm:$0xff]
    %v662 = vld [vmem:[#allocation10 + $0xd8] sm:$0xff]
    %v663 = vld [vmem:[#allocation10 + $0xe0] sm:$0xff]
    %v664 = vld [vmem:[#allocation10 + $0xe8] sm:$0xff]
    %v665 = vld [vmem:[#allocation10 + $0xf0] sm:$0xff]
    %v666 = vld [vmem:[#allocation10 + $0xf8] sm:$0xff]
    %v699 = vunpack.c.l.b16 %v635
    %v700 = vunpack.c.h.b16 %v635
    %v701 = vunpack.c.l.b16 %v636
    %v702 = vunpack.c.h.b16 %v636
    %v703 = vunpack.c.l.b16 %v637
    %v704 = vunpack.c.h.b16 %v637
    %v705 = vunpack.c.l.b16 %v638
    %v706 = vunpack.c.h.b16 %v638
    %v707 = vunpack.c.l.b16 %v639
    %v708 = vunpack.c.h.b16 %v639
    %v709 = vunpack.c.l.b16 %v640
    %v710 = vunpack.c.h.b16 %v640
    %v711 = vunpack.c.l.b16 %v641
    %v712 = vunpack.c.h.b16 %v641
    %v713 = vunpack.c.l.b16 %v642
    %v714 = vunpack.c.h.b16 %v642
    %v715 = vunpack.c.l.b16 %v643
    %v716 = vunpack.c.h.b16 %v643
    %v717 = vunpack.c.l.b16 %v644
    %v718 = vunpack.c.h.b16 %v644
    %v719 = vunpack.c.l.b16 %v645
    %v720 = vunpack.c.h.b16 %v645
    %v721 = vunpack.c.l.b16 %v646
    %v722 = vunpack.c.h.b16 %v646
    %v723 = vunpack.c.l.b16 %v647
    %v724 = vunpack.c.h.b16 %v647
    %v725 = vunpack.c.l.b16 %v648
    %v726 = vunpack.c.h.b16 %v648
    %v727 = vunpack.c.l.b16 %v649
    %v728 = vunpack.c.h.b16 %v649
    %v729 = vunpack.c.l.b16 %v650
    %v730 = vunpack.c.h.b16 %v650
    %v731 = vunpack.c.l.b16 %v651
    %v732 = vunpack.c.h.b16 %v651
    %v733 = vunpack.c.l.b16 %v652
    %v734 = vunpack.c.h.b16 %v652
    %v735 = vunpack.c.l.b16 %v653
    %v736 = vunpack.c.h.b16 %v653
    %v737 = vunpack.c.l.b16 %v654
    %v738 = vunpack.c.h.b16 %v654
    %v739 = vunpack.c.l.b16 %v655
    %v740 = vunpack.c.h.b16 %v655
    %v741 = vunpack.c.l.b16 %v656
    %v742 = vunpack.c.h.b16 %v656
    %v743 = vunpack.c.l.b16 %v657
    %v744 = vunpack.c.h.b16 %v657
    %v745 = vunpack.c.l.b16 %v658
    %v746 = vunpack.c.h.b16 %v658
    %v747 = vunpack.c.l.b16 %v659
    %v748 = vunpack.c.h.b16 %v659
    %v749 = vunpack.c.l.b16 %v660
    %v750 = vunpack.c.h.b16 %v660
    %v751 = vunpack.c.l.b16 %v661
    %v752 = vunpack.c.h.b16 %v661
    %v753 = vunpack.c.l.b16 %v662
    %v754 = vunpack.c.h.b16 %v662
    %v755 = vunpack.c.l.b16 %v663
    %v756 = vunpack.c.h.b16 %v663
    %v757 = vunpack.c.l.b16 %v664
    %v758 = vunpack.c.h.b16 %v664
    %v759 = vunpack.c.l.b16 %v665
    %v760 = vunpack.c.h.b16 %v665
    %v761 = vunpack.c.l.b16 %v666
    %v762 = vunpack.c.h.b16 %v666
    %v763 = vpack.c.b16 %v703, %v699
    %v764 = vpack.c.b16 %v704, %v700
    %v765 = vpack.c.b16 %v705, %v701
    %v766 = vpack.c.b16 %v706, %v702
    %v767 = vpack.c.b16 %v711, %v707
    %v768 = vpack.c.b16 %v712, %v708
    %v769 = vpack.c.b16 %v713, %v709
    %v770 = vpack.c.b16 %v714, %v710
    %v771 = vpack.c.b16 %v719, %v715
    %v772 = vpack.c.b16 %v720, %v716
    %v773 = vpack.c.b16 %v721, %v717
    %v774 = vpack.c.b16 %v722, %v718
    %v775 = vpack.c.b16 %v727, %v723
    %v776 = vpack.c.b16 %v728, %v724
    %v777 = vpack.c.b16 %v729, %v725
    %v778 = vpack.c.b16 %v730, %v726
    %v779 = vpack.c.b16 %v735, %v731
    %v780 = vpack.c.b16 %v736, %v732
    %v781 = vpack.c.b16 %v737, %v733
    %v782 = vpack.c.b16 %v738, %v734
    %v783 = vpack.c.b16 %v743, %v739
    %v784 = vpack.c.b16 %v744, %v740
    %v785 = vpack.c.b16 %v745, %v741
    %v786 = vpack.c.b16 %v746, %v742
    %v787 = vpack.c.b16 %v751, %v747
    %v788 = vpack.c.b16 %v752, %v748
    %v789 = vpack.c.b16 %v753, %v749
    %v790 = vpack.c.b16 %v754, %v750
    %v791 = vpack.c.b16 %v759, %v755
    %v792 = vpack.c.b16 %v760, %v756
    %v793 = vpack.c.b16 %v761, %v757
    %v794 = vpack.c.b16 %v762, %v758
    %827 = vmatprep.subr.bf16.mxu0 %v792
    %828 = vmatpush1.bf16.msra.mxu0 %v791
    %829 = vmatprep.subr.bf16.mxu0 %v788
    %830 = vmatpush1.bf16.msra.mxu0 %v787
    %831 = vmatprep.subr.bf16.mxu0 %v784
    %832 = vmatpush1.bf16.msra.mxu0 %v783
    %833 = vmatprep.subr.bf16.mxu0 %v780
    %834 = vmatpush1.bf16.msra.mxu0 %v779
    %835 = vmatprep.subr.bf16.mxu0 %v776
    %836 = vmatpush1.bf16.msra.mxu0 %v775
    %837 = vmatprep.subr.bf16.mxu0 %v772
    %838 = vmatpush1.bf16.msra.mxu0 %v771
    %839 = vmatprep.subr.bf16.mxu0 %v768
    %840 = vmatpush1.bf16.msra.mxu0 %v767
    %841 = vmatprep.subr.bf16.mxu0 %v764
    %842 = vmatpush1.bf16.msra.mxu0 %v763
    %843 = vmatprep.subr.bf16.mxu0 0
    %844 = vmatpush2.bf16.msra.mxu0 0
    %845 = vmatprep.subr.bf16.mxu0 0
    %846 = vmatpush2.bf16.msra.mxu0 0
    %847 = vmatprep.subr.bf16.mxu0 0
    %848 = vmatpush2.bf16.msra.mxu0 0
    %849 = vmatprep.subr.bf16.mxu0 0
    %850 = vmatpush2.bf16.msra.mxu0 0
    %851 = vmatprep.subr.bf16.mxu0 0
    %852 = vmatpush2.bf16.msra.mxu0 0
    %853 = vmatprep.subr.bf16.mxu0 0
    %854 = vmatpush2.bf16.msra.mxu0 0
    %855 = vmatprep.subr.bf16.mxu0 0
    %856 = vmatpush2.bf16.msra.mxu0 0
    %857 = vmatprep.subr.bf16.mxu0 0
    %858 = vmatpush2.bf16.msra.mxu0 0
    %859 = vmatprep.mubr.bf16.mxu0 0
    %860 = vmatmul.mubr.bf16.gmra.mxu0 %v634
    %v861 = vpop.f32.mrf.mxu0
    %v862 = vadd.f32 0.0, %v861
    %v863 = vpop.f32.mrf.mxu0
    %v864 = vadd.f32 0.0, %v863
    %v865 = vpop.f32.mrf.mxu0
    %v866 = vpop.f32.mrf.mxu0
    %867 = vdwg.mxu0
    %868 = vmatprep.subr.bf16.mxu0 %v794
    %869 = vmatpush1.bf16.msra.mxu0 %v793
    %870 = vmatprep.subr.bf16.mxu0 %v790
    %871 = vmatpush1.bf16.msra.mxu0 %v789
    %872 = vmatprep.subr.bf16.mxu0 %v786
    %873 = vmatpush1.bf16.msra.mxu0 %v785
    %874 = vmatprep.subr.bf16.mxu0 %v782
    %875 = vmatpush1.bf16.msra.mxu0 %v781
    %876 = vmatprep.subr.bf16.mxu0 %v778
    %877 = vmatpush1.bf16.msra.mxu0 %v777
    %878 = vmatprep.subr.bf16.mxu0 %v774
    %879 = vmatpush1.bf16.msra.mxu0 %v773
    %880 = vmatprep.subr.bf16.mxu0 %v770
    %881 = vmatpush1.bf16.msra.mxu0 %v769
    %882 = vmatprep.subr.bf16.mxu0 %v766
    %883 = vmatpush1.bf16.msra.mxu0 %v765
    %884 = vmatprep.subr.bf16.mxu0 0
    %885 = vmatpush2.bf16.msra.mxu0 0
    %886 = vmatprep.subr.bf16.mxu0 0
    %887 = vmatpush2.bf16.msra.mxu0 0
    %888 = vmatprep.subr.bf16.mxu0 0
    %889 = vmatpush2.bf16.msra.mxu0 0
    %890 = vmatprep.subr.bf16.mxu0 0
    %891 = vmatpush2.bf16.msra.mxu0 0
    %892 = vmatprep.subr.bf16.mxu0 0
    %893 = vmatpush2.bf16.msra.mxu0 0
    %894 = vmatprep.subr.bf16.mxu0 0
    %895 = vmatpush2.bf16.msra.mxu0 0
    %896 = vmatprep.subr.bf16.mxu0 0
    %897 = vmatpush2.bf16.msra.mxu0 0
    %898 = vmatprep.subr.bf16.mxu0 0
    %899 = vmatpush2.bf16.msra.mxu0 0
    %900 = vmatprep.mubr.bf16.mxu0 0
    %901 = vmatmul.mubr.bf16.gmra.mxu0 %v634
    %v902 = vpop.f32.mrf.mxu0
    %v903 = vadd.f32 0.0, %v902
    %v904 = vpop.f32.mrf.mxu0
    %v905 = vadd.f32 0.0, %v904
    %v906 = vpop.f32.mrf.mxu0
    %v907 = vpop.f32.mrf.mxu0
    %908 = vdwg.mxu0
    %v909 = vadd.f32 %v630, %v862
    %v910 = vadd.f32 %v631, %v864
    %v911 = vadd.f32 %v632, %v903
    %v912 = vadd.f32 %v633, %v905
    %v913 = vxor.u32 %v909, 2147483648
    %v914 = vmul.f32 %v913, 1.442695
    %v915 = vpow.pop %v914
    %v916 = vadd.f32 %v915, 1.0
    %v917 = vrcp.pop %v916
    %v918 = vmul.f32 1.0, %v917
    %v919 = vxor.u32 %v910, 2147483648
    %v920 = vmul.f32 %v919, 1.442695
    %v921 = vpow.pop %v920
    %v922 = vadd.f32 %v921, 1.0
    %v923 = vrcp.pop %v922
    %v924 = vmul.f32 1.0, %v923
    %v925 = vtanh.pop %v911
    %v926 = vxor.u32 %v912, 2147483648
    %v927 = vmul.f32 %v926, 1.442695
    %v928 = vpow.pop %v927
    %v929 = vadd.f32 %v928, 1.0
    %v930 = vrcp.pop %v929
    %v931 = vmul.f32 1.0, %v930
    %v932 = vmul.f32 %v924, %v627
    %v933 = vmul.f32 %v918, %v925
    %v934 = vadd.f32 %v932, %v933
    %v935 = vtanh.pop %v934
    %v936 = vmul.f32 %v931, %v935
    %s937 = scalar_lea.vmem [#allocation2], 16
    %v938 = vld [vmem:[%s937] sm:$0xff]
    %v939 = vld [vmem:[%s937 + $0x8] sm:$0xff]
    %v940 = vunpack.c.l.bf16 %v938
    %v941 = vunpack.c.h.bf16 %v938
    %v942 = vunpack.c.l.bf16 %v939
    %v943 = vunpack.c.h.bf16 %v939
    %v944 = vpack.c.bf16 %v936, %v936
    %945 = vmatprep.subr.bf16.mxu0 %v792
    %946 = vmatpush1.bf16.msra.mxu0 %v791
    %947 = vmatprep.subr.bf16.mxu0 %v788
    %948 = vmatpush1.bf16.msra.mxu0 %v787
    %949 = vmatprep.subr.bf16.mxu0 %v784
    %950 = vmatpush1.bf16.msra.mxu0 %v783
    %951 = vmatprep.subr.bf16.mxu0 %v780
    %952 = vmatpush1.bf16.msra.mxu0 %v779
    %953 = vmatprep.subr.bf16.mxu0 %v776
    %954 = vmatpush1.bf16.msra.mxu0 %v775
    %955 = vmatprep.subr.bf16.mxu0 %v772
    %956 = vmatpush1.bf16.msra.mxu0 %v771
    %957 = vmatprep.subr.bf16.mxu0 %v768
    %958 = vmatpush1.bf16.msra.mxu0 %v767
    %959 = vmatprep.subr.bf16.mxu0 %v764
    %960 = vmatpush1.bf16.msra.mxu0 %v763
    %961 = vmatprep.subr.bf16.mxu0 0
    %962 = vmatpush2.bf16.msra.mxu0 0
    %963 = vmatprep.subr.bf16.mxu0 0
    %964 = vmatpush2.bf16.msra.mxu0 0
    %965 = vmatprep.subr.bf16.mxu0 0
    %966 = vmatpush2.bf16.msra.mxu0 0
    %967 = vmatprep.subr.bf16.mxu0 0
    %968 = vmatpush2.bf16.msra.mxu0 0
    %969 = vmatprep.subr.bf16.mxu0 0
    %970 = vmatpush2.bf16.msra.mxu0 0
    %971 = vmatprep.subr.bf16.mxu0 0
    %972 = vmatpush2.bf16.msra.mxu0 0
    %973 = vmatprep.subr.bf16.mxu0 0
    %974 = vmatpush2.bf16.msra.mxu0 0
    %975 = vmatprep.subr.bf16.mxu0 0
    %976 = vmatpush2.bf16.msra.mxu0 0
    %977 = vmatprep.mubr.bf16.mxu0 0
    %978 = vmatmul.mubr.bf16.gmra.mxu0 %v944
    %v979 = vpop.f32.mrf.mxu0
    %v980 = vadd.f32 0.0, %v979
    %v981 = vpop.f32.mrf.mxu0
    %v982 = vadd.f32 0.0, %v981
    %v983 = vpop.f32.mrf.mxu0
    %v984 = vpop.f32.mrf.mxu0
    %985 = vdwg.mxu0
    %986 = vmatprep.subr.bf16.mxu0 %v794
    %987 = vmatpush1.bf16.msra.mxu0 %v793
    %988 = vmatprep.subr.bf16.mxu0 %v790
    %989 = vmatpush1.bf16.msra.mxu0 %v789
    %990 = vmatprep.subr.bf16.mxu0 %v786
    %991 = vmatpush1.bf16.msra.mxu0 %v785
    %992 = vmatprep.subr.bf16.mxu0 %v782
    %993 = vmatpush1.bf16.msra.mxu0 %v781
    %994 = vmatprep.subr.bf16.mxu0 %v778
    %995 = vmatpush1.bf16.msra.mxu0 %v777
    %996 = vmatprep.subr.bf16.mxu0 %v774
    %997 = vmatpush1.bf16.msra.mxu0 %v773
    %998 = vmatprep.subr.bf16.mxu0 %v770
    %999 = vmatpush1.bf16.msra.mxu0 %v769
    %1000 = vmatprep.subr.bf16.mxu0 %v766
    %1001 = vmatpush1.bf16.msra.mxu0 %v765
    %1002 = vmatprep.subr.bf16.mxu0 0
    %1003 = vmatpush2.bf16.msra.mxu0 0
    %1004 = vmatprep.subr.bf16.mxu0 0
    %1005 = vmatpush2.bf16.msra.mxu0 0
    %1006 = vmatprep.subr.bf16.mxu0 0
    %1007 = vmatpush2.bf16.msra.mxu0 0
    %1008 = vmatprep.subr.bf16.mxu0 0
    %1009 = vmatpush2.bf16.msra.mxu0 0
    %1010 = vmatprep.subr.bf16.mxu0 0
    %1011 = vmatpush2.bf16.msra.mxu0 0
    %1012 = vmatprep.subr.bf16.mxu0 0
    %1013 = vmatpush2.bf16.msra.mxu0 0
    %1014 = vmatprep.subr.bf16.mxu0 0
    %1015 = vmatpush2.bf16.msra.mxu0 0
    %1016 = vmatprep.subr.bf16.mxu0 0
    %1017 = vmatpush2.bf16.msra.mxu0 0
    %1018 = vmatprep.mubr.bf16.mxu0 0
    %1019 = vmatmul.mubr.bf16.gmra.mxu0 %v944
    %v1020 = vpop.f32.mrf.mxu0
    %v1021 = vadd.f32 0.0, %v1020
    %v1022 = vpop.f32.mrf.mxu0
    %v1023 = vadd.f32 0.0, %v1022
    %v1024 = vpop.f32.mrf.mxu0
    %v1025 = vpop.f32.mrf.mxu0
    %1026 = vdwg.mxu0
    %v1027 = vadd.f32 %v940, %v980
    %v1028 = vadd.f32 %v941, %v982
    %v1029 = vadd.f32 %v942, %v1021
    %v1030 = vadd.f32 %v943, %v1023
    %v1031 = vxor.u32 %v1027, 2147483648
    %v1032 = vmul.f32 %v1031, 1.442695
    %v1033 = vpow.pop %v1032
    %v1034 = vadd.f32 %v1033, 1.0
    %v1035 = vrcp.pop %v1034
    %v1036 = vmul.f32 1.0, %v1035
    %v1037 = vxor.u32 %v1028, 2147483648
    %v1038 = vmul.f32 %v1037, 1.442695
    %v1039 = vpow.pop %v1038
    %v1040 = vadd.f32 %v1039, 1.0
    %v1041 = vrcp.pop %v1040
    %v1042 = vmul.f32 1.0, %v1041
    %v1043 = vtanh.pop %v1029
    %v1044 = vxor.u32 %v1030, 2147483648
    %v1045 = vmul.f32 %v1044, 1.442695
    %v1046 = vpow.pop %v1045
    %v1047 = vadd.f32 %v1046, 1.0
    %v1048 = vrcp.pop %v1047
    %v1049 = vmul.f32 1.0, %v1048
    %v1050 = vmul.f32 %v1042, %v934
    %v1051 = vmul.f32 %v1036, %v1043
    %v1052 = vadd.f32 %v1050, %v1051
    %v1053 = vtanh.pop %v1052
    %v1054 = vmul.f32 %v1049, %v1053
    %s1055 = scalar_lea.vmem [#allocation2], 32
    %v1056 = vld [vmem:[%s1055] sm:$0xff]
    %v1057 = vld [vmem:[%s1055 + $0x8] sm:$0xff]
    %v1058 = vunpack.c.l.bf16 %v1056
    %v1059 = vunpack.c.h.bf16 %v1056
    %v1060 = vunpack.c.l.bf16 %v1057
    %v1061 = vunpack.c.h.bf16 %v1057
    %v1062 = vpack.c.bf16 %v1054, %v1054
    %1063 = vmatprep.subr.bf16.mxu0 %v792
    %1064 = vmatpush1.bf16.msra.mxu0 %v791
    %1065 = vmatprep.subr.bf16.mxu0 %v788
    %1066 = vmatpush1.bf16.msra.mxu0 %v787
    %1067 = vmatprep.subr.bf16.mxu0 %v784
    %1068 = vmatpush1.bf16.msra.mxu0 %v783
    %1069 = vmatprep.subr.bf16.mxu0 %v780
    %1070 = vmatpush1.bf16.msra.mxu0 %v779
    %1071 = vmatprep.subr.bf16.mxu0 %v776
    %1072 = vmatpush1.bf16.msra.mxu0 %v775
    %1073 = vmatprep.subr.bf16.mxu0 %v772
    %1074 = vmatpush1.bf16.msra.mxu0 %v771
    %1075 = vmatprep.subr.bf16.mxu0 %v768
    %1076 = vmatpush1.bf16.msra.mxu0 %v767
    %1077 = vmatprep.subr.bf16.mxu0 %v764
    %1078 = vmatpush1.bf16.msra.mxu0 %v763
    %1079 = vmatprep.subr.bf16.mxu0 0
    %1080 = vmatpush2.bf16.msra.mxu0 0
    %1081 = vmatprep.subr.bf16.mxu0 0
    %1082 = vmatpush2.bf16.msra.mxu0 0
    %1083 = vmatprep.subr.bf16.mxu0 0
    %1084 = vmatpush2.bf16.msra.mxu0 0
    %1085 = vmatprep.subr.bf16.mxu0 0
    %1086 = vmatpush2.bf16.msra.mxu0 0
    %1087 = vmatprep.subr.bf16.mxu0 0
    %1088 = vmatpush2.bf16.msra.mxu0 0
    %1089 = vmatprep.subr.bf16.mxu0 0
    %1090 = vmatpush2.bf16.msra.mxu0 0
    %1091 = vmatprep.subr.bf16.mxu0 0
    %1092 = vmatpush2.bf16.msra.mxu0 0
    %1093 = vmatprep.subr.bf16.mxu0 0
    %1094 = vmatpush2.bf16.msra.mxu0 0
    %1095 = vmatprep.mubr.bf16.mxu0 0
    %1096 = vmatmul.mubr.bf16.gmra.mxu0 %v1062
    %v1097 = vpop.f32.mrf.mxu0
    %v1098 = vadd.f32 0.0, %v1097
    %v1099 = vpop.f32.mrf.mxu0
    %v1100 = vadd.f32 0.0, %v1099
    %v1101 = vpop.f32.mrf.mxu0
    %v1102 = vpop.f32.mrf.mxu0
    %1103 = vdwg.mxu0
    %1104 = vmatprep.subr.bf16.mxu0 %v794
    %1105 = vmatpush1.bf16.msra.mxu0 %v793
    %1106 = vmatprep.subr.bf16.mxu0 %v790
    %1107 = vmatpush1.bf16.msra.mxu0 %v789
    %1108 = vmatprep.subr.bf16.mxu0 %v786
    %1109 = vmatpush1.bf16.msra.mxu0 %v785
    %1110 = vmatprep.subr.bf16.mxu0 %v782
    %1111 = vmatpush1.bf16.msra.mxu0 %v781
    %1112 = vmatprep.subr.bf16.mxu0 %v778
    %1113 = vmatpush1.bf16.msra.mxu0 %v777
    %1114 = vmatprep.subr.bf16.mxu0 %v774
    %1115 = vmatpush1.bf16.msra.mxu0 %v773
    %1116 = vmatprep.subr.bf16.mxu0 %v770
    %1117 = vmatpush1.bf16.msra.mxu0 %v769
    %1118 = vmatprep.subr.bf16.mxu0 %v766
    %1119 = vmatpush1.bf16.msra.mxu0 %v765
    %1120 = vmatprep.subr.bf16.mxu0 0
    %1121 = vmatpush2.bf16.msra.mxu0 0
    %1122 = vmatprep.subr.bf16.mxu0 0
    %1123 = vmatpush2.bf16.msra.mxu0 0
    %1124 = vmatprep.subr.bf16.mxu0 0
    %1125 = vmatpush2.bf16.msra.mxu0 0
    %1126 = vmatprep.subr.bf16.mxu0 0
    %1127 = vmatpush2.bf16.msra.mxu0 0
    %1128 = vmatprep.subr.bf16.mxu0 0
    %1129 = vmatpush2.bf16.msra.mxu0 0
    %1130 = vmatprep.subr.bf16.mxu0 0
    %1131 = vmatpush2.bf16.msra.mxu0 0
    %1132 = vmatprep.subr.bf16.mxu0 0
    %1133 = vmatpush2.bf16.msra.mxu0 0
    %1134 = vmatprep.subr.bf16.mxu0 0
    %1135 = vmatpush2.bf16.msra.mxu0 0
    %1136 = vmatprep.mubr.bf16.mxu0 0
    %1137 = vmatmul.mubr.bf16.gmra.mxu0 %v1062
    %v1138 = vpop.f32.mrf.mxu0
    %v1139 = vadd.f32 0.0, %v1138
    %v1140 = vpop.f32.mrf.mxu0
    %v1141 = vadd.f32 0.0, %v1140
    %v1142 = vpop.f32.mrf.mxu0
    %v1143 = vpop.f32.mrf.mxu0
    %1144 = vdwg.mxu0
    %v1145 = vadd.f32 %v1058, %v1098
    %v1146 = vadd.f32 %v1059, %v1100
    %v1147 = vadd.f32 %v1060, %v1139
    %v1148 = vadd.f32 %v1061, %v1141
    %v1149 = vxor.u32 %v1145, 2147483648
    %v1150 = vmul.f32 %v1149, 1.442695
    %v1151 = vpow.pop %v1150
    %v1152 = vadd.f32 %v1151, 1.0
    %v1153 = vrcp.pop %v1152
    %v1154 = vmul.f32 1.0, %v1153
    %v1155 = vxor.u32 %v1146, 2147483648
    %v1156 = vmul.f32 %v1155, 1.442695
    %v1157 = vpow.pop %v1156
    %v1158 = vadd.f32 %v1157, 1.0
    %v1159 = vrcp.pop %v1158
    %v1160 = vmul.f32 1.0, %v1159
    %v1161 = vtanh.pop %v1147
    %v1162 = vxor.u32 %v1148, 2147483648
    %v1163 = vmul.f32 %v1162, 1.442695
    %v1164 = vpow.pop %v1163
    %v1165 = vadd.f32 %v1164, 1.0
    %v1166 = vrcp.pop %v1165
    %v1167 = vmul.f32 1.0, %v1166
    %v1168 = vmul.f32 %v1160, %v1052
    %v1169 = vmul.f32 %v1154, %v1161
    %v1170 = vadd.f32 %v1168, %v1169
    %v1171 = vtanh.pop %v1170
    %v1172 = vmul.f32 %v1167, %v1171
    %s1173 = scalar_lea.vmem [#allocation2], 48
    %v1174 = vld [vmem:[%s1173] sm:$0xff]
    %v1175 = vld [vmem:[%s1173 + $0x8] sm:$0xff]
    %v1176 = vunpack.c.l.bf16 %v1174
    %v1177 = vunpack.c.h.bf16 %v1174
    %v1178 = vunpack.c.l.bf16 %v1175
    %v1179 = vunpack.c.h.bf16 %v1175
    %v1180 = vpack.c.bf16 %v1172, %v1172
    %1181 = vmatprep.subr.bf16.mxu0 %v792
    %1182 = vmatpush1.bf16.msra.mxu0 %v791
    %1183 = vmatprep.subr.bf16.mxu0 %v788
    %1184 = vmatpush1.bf16.msra.mxu0 %v787
    %1185 = vmatprep.subr.bf16.mxu0 %v784
    %1186 = vmatpush1.bf16.msra.mxu0 %v783
    %1187 = vmatprep.subr.bf16.mxu0 %v780
    %1188 = vmatpush1.bf16.msra.mxu0 %v779
    %1189 = vmatprep.subr.bf16.mxu0 %v776
    %1190 = vmatpush1.bf16.msra.mxu0 %v775
    %1191 = vmatprep.subr.bf16.mxu0 %v772
    %1192 = vmatpush1.bf16.msra.mxu0 %v771
    %1193 = vmatprep.subr.bf16.mxu0 %v768
    %1194 = vmatpush1.bf16.msra.mxu0 %v767
    %1195 = vmatprep.subr.bf16.mxu0 %v764
    %1196 = vmatpush1.bf16.msra.mxu0 %v763
    %1197 = vmatprep.subr.bf16.mxu0 0
    %1198 = vmatpush2.bf16.msra.mxu0 0
    %1199 = vmatprep.subr.bf16.mxu0 0
    %1200 = vmatpush2.bf16.msra.mxu0 0
    %1201 = vmatprep.subr.bf16.mxu0 0
    %1202 = vmatpush2.bf16.msra.mxu0 0
    %1203 = vmatprep.subr.bf16.mxu0 0
    %1204 = vmatpush2.bf16.msra.mxu0 0
    %1205 = vmatprep.subr.bf16.mxu0 0
    %1206 = vmatpush2.bf16.msra.mxu0 0
    %1207 = vmatprep.subr.bf16.mxu0 0
    %1208 = vmatpush2.bf16.msra.mxu0 0
    %1209 = vmatprep.subr.bf16.mxu0 0
    %1210 = vmatpush2.bf16.msra.mxu0 0
    %1211 = vmatprep.subr.bf16.mxu0 0
    %1212 = vmatpush2.bf16.msra.mxu0 0
    %1213 = vmatprep.mubr.bf16.mxu0 0
    %1214 = vmatmul.mubr.bf16.gmra.mxu0 %v1180
    %v1215 = vpop.f32.mrf.mxu0
    %v1216 = vadd.f32 0.0, %v1215
    %v1217 = vpop.f32.mrf.mxu0
    %v1218 = vadd.f32 0.0, %v1217
    %v1219 = vpop.f32.mrf.mxu0
    %v1220 = vpop.f32.mrf.mxu0
    %1221 = vdwg.mxu0
    %1222 = vmatprep.subr.bf16.mxu0 %v794
    %1223 = vmatpush1.bf16.msra.mxu0 %v793
    %1224 = vmatprep.subr.bf16.mxu0 %v790
    %1225 = vmatpush1.bf16.msra.mxu0 %v789
    %1226 = vmatprep.subr.bf16.mxu0 %v786
    %1227 = vmatpush1.bf16.msra.mxu0 %v785
    %1228 = vmatprep.subr.bf16.mxu0 %v782
    %1229 = vmatpush1.bf16.msra.mxu0 %v781
    %1230 = vmatprep.subr.bf16.mxu0 %v778
    %1231 = vmatpush1.bf16.msra.mxu0 %v777
    %1232 = vmatprep.subr.bf16.mxu0 %v774
    %1233 = vmatpush1.bf16.msra.mxu0 %v773
    %1234 = vmatprep.subr.bf16.mxu0 %v770
    %1235 = vmatpush1.bf16.msra.mxu0 %v769
    %1236 = vmatprep.subr.bf16.mxu0 %v766
    %1237 = vmatpush1.bf16.msra.mxu0 %v765
    %1238 = vmatprep.subr.bf16.mxu0 0
    %1239 = vmatpush2.bf16.msra.mxu0 0
    %1240 = vmatprep.subr.bf16.mxu0 0
    %1241 = vmatpush2.bf16.msra.mxu0 0
    %1242 = vmatprep.subr.bf16.mxu0 0
    %1243 = vmatpush2.bf16.msra.mxu0 0
    %1244 = vmatprep.subr.bf16.mxu0 0
    %1245 = vmatpush2.bf16.msra.mxu0 0
    %1246 = vmatprep.subr.bf16.mxu0 0
    %1247 = vmatpush2.bf16.msra.mxu0 0
    %1248 = vmatprep.subr.bf16.mxu0 0
    %1249 = vmatpush2.bf16.msra.mxu0 0
    %1250 = vmatprep.subr.bf16.mxu0 0
    %1251 = vmatpush2.bf16.msra.mxu0 0
    %1252 = vmatprep.subr.bf16.mxu0 0
    %1253 = vmatpush2.bf16.msra.mxu0 0
    %1254 = vmatprep.mubr.bf16.mxu0 0
    %1255 = vmatmul.mubr.bf16.gmra.mxu0 %v1180
    %v1256 = vpop.f32.mrf.mxu0
    %v1257 = vadd.f32 0.0, %v1256
    %v1258 = vpop.f32.mrf.mxu0
    %v1259 = vadd.f32 0.0, %v1258
    %v1260 = vpop.f32.mrf.mxu0
    %v1261 = vpop.f32.mrf.mxu0
    %1262 = vdwg.mxu0
    %v1263 = vadd.f32 %v1176, %v1216
    %v1264 = vadd.f32 %v1177, %v1218
    %v1265 = vadd.f32 %v1178, %v1257
    %v1266 = vadd.f32 %v1179, %v1259
    %v1267 = vxor.u32 %v1263, 2147483648
    %v1268 = vmul.f32 %v1267, 1.442695
    %v1269 = vpow.pop %v1268
    %v1270 = vadd.f32 %v1269, 1.0
    %v1271 = vrcp.pop %v1270
    %v1272 = vmul.f32 1.0, %v1271
    %v1273 = vxor.u32 %v1264, 2147483648
    %v1274 = vmul.f32 %v1273, 1.442695
    %v1275 = vpow.pop %v1274
    %v1276 = vadd.f32 %v1275, 1.0
    %v1277 = vrcp.pop %v1276
    %v1278 = vmul.f32 1.0, %v1277
    %v1279 = vtanh.pop %v1265
    %v1280 = vxor.u32 %v1266, 2147483648
    %v1281 = vmul.f32 %v1280, 1.442695
    %v1282 = vpow.pop %v1281
    %v1283 = vadd.f32 %v1282, 1.0
    %v1284 = vrcp.pop %v1283
    %v1285 = vmul.f32 1.0, %v1284
    %v1286 = vmul.f32 %v1278, %v1170
    %v1287 = vmul.f32 %v1272, %v1279
    %v1288 = vadd.f32 %v1286, %v1287
    %v1289 = vtanh.pop %v1288
    %v1290 = vmul.f32 %v1285, %v1289
    %s1291 = scalar_lea.vmem [#allocation2], 64
    %v1292 = vld [vmem:[%s1291] sm:$0xff]
    %v1293 = vld [vmem:[%s1291 + $0x8] sm:$0xff]
    %v1294 = vunpack.c.l.bf16 %v1292
    %v1295 = vunpack.c.h.bf16 %v1292
    %v1296 = vunpack.c.l.bf16 %v1293
    %v1297 = vunpack.c.h.bf16 %v1293
    %v1298 = vpack.c.bf16 %v1290, %v1290
    %1299 = vmatprep.subr.bf16.mxu0 %v792
    %1300 = vmatpush1.bf16.msra.mxu0 %v791
    %1301 = vmatprep.subr.bf16.mxu0 %v788
    %1302 = vmatpush1.bf16.msra.mxu0 %v787
    %1303 = vmatprep.subr.bf16.mxu0 %v784
    %1304 = vmatpush1.bf16.msra.mxu0 %v783
    %1305 = vmatprep.subr.bf16.mxu0 %v780
    %1306 = vmatpush1.bf16.msra.mxu0 %v779
    %1307 = vmatprep.subr.bf16.mxu0 %v776
    %1308 = vmatpush1.bf16.msra.mxu0 %v775
    %1309 = vmatprep.subr.bf16.mxu0 %v772
    %1310 = vmatpush1.bf16.msra.mxu0 %v771
    %1311 = vmatprep.subr.bf16.mxu0 %v768
    %1312 = vmatpush1.bf16.msra.mxu0 %v767
    %1313 = vmatprep.subr.bf16.mxu0 %v764
    %1314 = vmatpush1.bf16.msra.mxu0 %v763
    %1315 = vmatprep.subr.bf16.mxu0 0
    %1316 = vmatpush2.bf16.msra.mxu0 0
    %1317 = vmatprep.subr.bf16.mxu0 0
    %1318 = vmatpush2.bf16.msra.mxu0 0
    %1319 = vmatprep.subr.bf16.mxu0 0
    %1320 = vmatpush2.bf16.msra.mxu0 0
    %1321 = vmatprep.subr.bf16.mxu0 0
    %1322 = vmatpush2.bf16.msra.mxu0 0
    %1323 = vmatprep.subr.bf16.mxu0 0
    %1324 = vmatpush2.bf16.msra.mxu0 0
    %1325 = vmatprep.subr.bf16.mxu0 0
    %1326 = vmatpush2.bf16.msra.mxu0 0
    %1327 = vmatprep.subr.bf16.mxu0 0
    %1328 = vmatpush2.bf16.msra.mxu0 0
    %1329 = vmatprep.subr.bf16.mxu0 0
    %1330 = vmatpush2.bf16.msra.mxu0 0
    %1331 = vmatprep.mubr.bf16.mxu0 0
    %1332 = vmatmul.mubr.bf16.gmra.mxu0 %v1298
    %v1333 = vpop.f32.mrf.mxu0
    %v1334 = vadd.f32 0.0, %v1333
    %v1335 = vpop.f32.mrf.mxu0
    %v1336 = vadd.f32 0.0, %v1335
    %v1337 = vpop.f32.mrf.mxu0
    %v1338 = vpop.f32.mrf.mxu0
    %1339 = vdwg.mxu0
    %1340 = vmatprep.subr.bf16.mxu0 %v794
    %1341 = vmatpush1.bf16.msra.mxu0 %v793
    %1342 = vmatprep.subr.bf16.mxu0 %v790
    %1343 = vmatpush1.bf16.msra.mxu0 %v789
    %1344 = vmatprep.subr.bf16.mxu0 %v786
    %1345 = vmatpush1.bf16.msra.mxu0 %v785
    %1346 = vmatprep.subr.bf16.mxu0 %v782
    %1347 = vmatpush1.bf16.msra.mxu0 %v781
    %1348 = vmatprep.subr.bf16.mxu0 %v778
    %1349 = vmatpush1.bf16.msra.mxu0 %v777
    %1350 = vmatprep.subr.bf16.mxu0 %v774
    %1351 = vmatpush1.bf16.msra.mxu0 %v773
    %1352 = vmatprep.subr.bf16.mxu0 %v770
    %1353 = vmatpush1.bf16.msra.mxu0 %v769
    %1354 = vmatprep.subr.bf16.mxu0 %v766
    %1355 = vmatpush1.bf16.msra.mxu0 %v765
    %1356 = vmatprep.subr.bf16.mxu0 0
    %1357 = vmatpush2.bf16.msra.mxu0 0
    %1358 = vmatprep.subr.bf16.mxu0 0
    %1359 = vmatpush2.bf16.msra.mxu0 0
    %1360 = vmatprep.subr.bf16.mxu0 0
    %1361 = vmatpush2.bf16.msra.mxu0 0
    %1362 = vmatprep.subr.bf16.mxu0 0
    %1363 = vmatpush2.bf16.msra.mxu0 0
    %1364 = vmatprep.subr.bf16.mxu0 0
    %1365 = vmatpush2.bf16.msra.mxu0 0
    %1366 = vmatprep.subr.bf16.mxu0 0
    %1367 = vmatpush2.bf16.msra.mxu0 0
    %1368 = vmatprep.subr.bf16.mxu0 0
    %1369 = vmatpush2.bf16.msra.mxu0 0
    %1370 = vmatprep.subr.bf16.mxu0 0
    %1371 = vmatpush2.bf16.msra.mxu0 0
    %1372 = vmatprep.mubr.bf16.mxu0 0
    %1373 = vmatmul.mubr.bf16.gmra.mxu0 %v1298
    %v1374 = vpop.f32.mrf.mxu0
    %v1375 = vadd.f32 0.0, %v1374
    %v1376 = vpop.f32.mrf.mxu0
    %v1377 = vadd.f32 0.0, %v1376
    %v1378 = vpop.f32.mrf.mxu0
    %v1379 = vpop.f32.mrf.mxu0
    %1380 = vdwg.mxu0
    %v1381 = vadd.f32 %v1294, %v1334
    %v1382 = vadd.f32 %v1295, %v1336
    %v1383 = vadd.f32 %v1296, %v1375
    %v1384 = vadd.f32 %v1297, %v1377
    %v1385 = vxor.u32 %v1381, 2147483648
    %v1386 = vmul.f32 %v1385, 1.442695
    %v1387 = vpow.pop %v1386
    %v1388 = vadd.f32 %v1387, 1.0
    %v1389 = vrcp.pop %v1388
    %v1390 = vmul.f32 1.0, %v1389
    %v1391 = vxor.u32 %v1382, 2147483648
    %v1392 = vmul.f32 %v1391, 1.442695
    %v1393 = vpow.pop %v1392
    %v1394 = vadd.f32 %v1393, 1.0
    %v1395 = vrcp.pop %v1394
    %v1396 = vmul.f32 1.0, %v1395
    %v1397 = vtanh.pop %v1383
    %v1398 = vxor.u32 %v1384, 2147483648
    %v1399 = vmul.f32 %v1398, 1.442695
    %v1400 = vpow.pop %v1399
    %v1401 = vadd.f32 %v1400, 1.0
    %v1402 = vrcp.pop %v1401
    %v1403 = vmul.f32 1.0, %v1402
    %v1404 = vmul.f32 %v1396, %v1288
    %v1405 = vmul.f32 %v1390, %v1397
    %v1406 = vadd.f32 %v1404, %v1405
    %v1407 = vtanh.pop %v1406
    %v1408 = vmul.f32 %v1403, %v1407
    %s1409 = scalar_lea.vmem [#allocation2], 80
    %v1410 = vld [vmem:[%s1409] sm:$0xff]
    %v1411 = vld [vmem:[%s1409 + $0x8] sm:$0xff]
    %v1412 = vunpack.c.l.bf16 %v1410
    %v1413 = vunpack.c.h.bf16 %v1410
    %v1414 = vunpack.c.l.bf16 %v1411
    %v1415 = vunpack.c.h.bf16 %v1411
    %v1416 = vpack.c.bf16 %v1408, %v1408
    %1417 = vmatprep.subr.bf16.mxu0 %v792
    %1418 = vmatpush1.bf16.msra.mxu0 %v791
    %1419 = vmatprep.subr.bf16.mxu0 %v788
    %1420 = vmatpush1.bf16.msra.mxu0 %v787
    %1421 = vmatprep.subr.bf16.mxu0 %v784
    %1422 = vmatpush1.bf16.msra.mxu0 %v783
    %1423 = vmatprep.subr.bf16.mxu0 %v780
    %1424 = vmatpush1.bf16.msra.mxu0 %v779
    %1425 = vmatprep.subr.bf16.mxu0 %v776
    %1426 = vmatpush1.bf16.msra.mxu0 %v775
    %1427 = vmatprep.subr.bf16.mxu0 %v772
    %1428 = vmatpush1.bf16.msra.mxu0 %v771
    %1429 = vmatprep.subr.bf16.mxu0 %v768
    %1430 = vmatpush1.bf16.msra.mxu0 %v767
    %1431 = vmatprep.subr.bf16.mxu0 %v764
    %1432 = vmatpush1.bf16.msra.mxu0 %v763
    %1433 = vmatprep.subr.bf16.mxu0 0
    %1434 = vmatpush2.bf16.msra.mxu0 0
    %1435 = vmatprep.subr.bf16.mxu0 0
    %1436 = vmatpush2.bf16.msra.mxu0 0
    %1437 = vmatprep.subr.bf16.mxu0 0
    %1438 = vmatpush2.bf16.msra.mxu0 0
    %1439 = vmatprep.subr.bf16.mxu0 0
    %1440 = vmatpush2.bf16.msra.mxu0 0
    %1441 = vmatprep.subr.bf16.mxu0 0
    %1442 = vmatpush2.bf16.msra.mxu0 0
    %1443 = vmatprep.subr.bf16.mxu0 0
    %1444 = vmatpush2.bf16.msra.mxu0 0
    %1445 = vmatprep.subr.bf16.mxu0 0
    %1446 = vmatpush2.bf16.msra.mxu0 0
    %1447 = vmatprep.subr.bf16.mxu0 0
    %1448 = vmatpush2.bf16.msra.mxu0 0
    %1449 = vmatprep.mubr.bf16.mxu0 0
    %1450 = vmatmul.mubr.bf16.gmra.mxu0 %v1416
    %v1451 = vpop.f32.mrf.mxu0
    %v1452 = vadd.f32 0.0, %v1451
    %v1453 = vpop.f32.mrf.mxu0
    %v1454 = vadd.f32 0.0, %v1453
    %v1455 = vpop.f32.mrf.mxu0
    %v1456 = vpop.f32.mrf.mxu0
    %1457 = vdwg.mxu0
    %1458 = vmatprep.subr.bf16.mxu0 %v794
    %1459 = vmatpush1.bf16.msra.mxu0 %v793
    %1460 = vmatprep.subr.bf16.mxu0 %v790
    %1461 = vmatpush1.bf16.msra.mxu0 %v789
    %1462 = vmatprep.subr.bf16.mxu0 %v786
    %1463 = vmatpush1.bf16.msra.mxu0 %v785
    %1464 = vmatprep.subr.bf16.mxu0 %v782
    %1465 = vmatpush1.bf16.msra.mxu0 %v781
    %1466 = vmatprep.subr.bf16.mxu0 %v778
    %1467 = vmatpush1.bf16.msra.mxu0 %v777
    %1468 = vmatprep.subr.bf16.mxu0 %v774
    %1469 = vmatpush1.bf16.msra.mxu0 %v773
    %1470 = vmatprep.subr.bf16.mxu0 %v770
    %1471 = vmatpush1.bf16.msra.mxu0 %v769
    %1472 = vmatprep.subr.bf16.mxu0 %v766
    %1473 = vmatpush1.bf16.msra.mxu0 %v765
    %1474 = vmatprep.subr.bf16.mxu0 0
    %1475 = vmatpush2.bf16.msra.mxu0 0
    %1476 = vmatprep.subr.bf16.mxu0 0
    %1477 = vmatpush2.bf16.msra.mxu0 0
    %1478 = vmatprep.subr.bf16.mxu0 0
    %1479 = vmatpush2.bf16.msra.mxu0 0
    %1480 = vmatprep.subr.bf16.mxu0 0
    %1481 = vmatpush2.bf16.msra.mxu0 0
    %1482 = vmatprep.subr.bf16.mxu0 0
    %1483 = vmatpush2.bf16.msra.mxu0 0
    %1484 = vmatprep.subr.bf16.mxu0 0
    %1485 = vmatpush2.bf16.msra.mxu0 0
    %1486 = vmatprep.subr.bf16.mxu0 0
    %1487 = vmatpush2.bf16.msra.mxu0 0
    %1488 = vmatprep.subr.bf16.mxu0 0
    %1489 = vmatpush2.bf16.msra.mxu0 0
    %1490 = vmatprep.mubr.bf16.mxu0 0
    %1491 = vmatmul.mubr.bf16.gmra.mxu0 %v1416
    %v1492 = vpop.f32.mrf.mxu0
    %v1493 = vadd.f32 0.0, %v1492
    %v1494 = vpop.f32.mrf.mxu0
    %v1495 = vadd.f32 0.0, %v1494
    %v1496 = vpop.f32.mrf.mxu0
    %v1497 = vpop.f32.mrf.mxu0
    %1498 = vdwg.mxu0
    %v1499 = vadd.f32 %v1412, %v1452
    %v1500 = vadd.f32 %v1413, %v1454
    %v1501 = vadd.f32 %v1414, %v1493
    %v1502 = vadd.f32 %v1415, %v1495
    %v1503 = vxor.u32 %v1499, 2147483648
    %v1504 = vmul.f32 %v1503, 1.442695
    %v1505 = vpow.pop %v1504
    %v1506 = vadd.f32 %v1505, 1.0
    %v1507 = vrcp.pop %v1506
    %v1508 = vmul.f32 1.0, %v1507
    %v1509 = vxor.u32 %v1500, 2147483648
    %v1510 = vmul.f32 %v1509, 1.442695
    %v1511 = vpow.pop %v1510
    %v1512 = vadd.f32 %v1511, 1.0
    %v1513 = vrcp.pop %v1512
    %v1514 = vmul.f32 1.0, %v1513
    %v1515 = vtanh.pop %v1501
    %v1516 = vxor.u32 %v1502, 2147483648
    %v1517 = vmul.f32 %v1516, 1.442695
    %v1518 = vpow.pop %v1517
    %v1519 = vadd.f32 %v1518, 1.0
    %v1520 = vrcp.pop %v1519
    %v1521 = vmul.f32 1.0, %v1520
    %v1522 = vmul.f32 %v1514, %v1406
    %v1523 = vmul.f32 %v1508, %v1515
    %v1524 = vadd.f32 %v1522, %v1523
    %v1525 = vtanh.pop %v1524
    %v1526 = vmul.f32 %v1521, %v1525
    %s1527 = scalar_lea.vmem [#allocation2], 96
    %v1528 = vld [vmem:[%s1527] sm:$0xff]
    %v1529 = vld [vmem:[%s1527 + $0x8] sm:$0xff]
    %v1530 = vunpack.c.l.bf16 %v1528
    %v1531 = vunpack.c.h.bf16 %v1528
    %v1532 = vunpack.c.l.bf16 %v1529
    %v1533 = vunpack.c.h.bf16 %v1529
    %v1534 = vpack.c.bf16 %v1526, %v1526
    %1535 = vmatprep.subr.bf16.mxu0 %v792
    %1536 = vmatpush1.bf16.msra.mxu0 %v791
    %1537 = vmatprep.subr.bf16.mxu0 %v788
    %1538 = vmatpush1.bf16.msra.mxu0 %v787
    %1539 = vmatprep.subr.bf16.mxu0 %v784
    %1540 = vmatpush1.bf16.msra.mxu0 %v783
    %1541 = vmatprep.subr.bf16.mxu0 %v780
    %1542 = vmatpush1.bf16.msra.mxu0 %v779
    %1543 = vmatprep.subr.bf16.mxu0 %v776
    %1544 = vmatpush1.bf16.msra.mxu0 %v775
    %1545 = vmatprep.subr.bf16.mxu0 %v772
    %1546 = vmatpush1.bf16.msra.mxu0 %v771
    %1547 = vmatprep.subr.bf16.mxu0 %v768
    %1548 = vmatpush1.bf16.msra.mxu0 %v767
    %1549 = vmatprep.subr.bf16.mxu0 %v764
    %1550 = vmatpush1.bf16.msra.mxu0 %v763
    %1551 = vmatprep.subr.bf16.mxu0 0
    %1552 = vmatpush2.bf16.msra.mxu0 0
    %1553 = vmatprep.subr.bf16.mxu0 0
    %1554 = vmatpush2.bf16.msra.mxu0 0
    %1555 = vmatprep.subr.bf16.mxu0 0
    %1556 = vmatpush2.bf16.msra.mxu0 0
    %1557 = vmatprep.subr.bf16.mxu0 0
    %1558 = vmatpush2.bf16.msra.mxu0 0
    %1559 = vmatprep.subr.bf16.mxu0 0
    %1560 = vmatpush2.bf16.msra.mxu0 0
    %1561 = vmatprep.subr.bf16.mxu0 0
    %1562 = vmatpush2.bf16.msra.mxu0 0
    %1563 = vmatprep.subr.bf16.mxu0 0
    %1564 = vmatpush2.bf16.msra.mxu0 0
    %1565 = vmatprep.subr.bf16.mxu0 0
    %1566 = vmatpush2.bf16.msra.mxu0 0
    %1567 = vmatprep.mubr.bf16.mxu0 0
    %1568 = vmatmul.mubr.bf16.gmra.mxu0 %v1534
    %v1569 = vpop.f32.mrf.mxu0
    %v1570 = vadd.f32 0.0, %v1569
    %v1571 = vpop.f32.mrf.mxu0
    %v1572 = vadd.f32 0.0, %v1571
    %v1573 = vpop.f32.mrf.mxu0
    %v1574 = vpop.f32.mrf.mxu0
    %1575 = vdwg.mxu0
    %1576 = vmatprep.subr.bf16.mxu0 %v794
    %1577 = vmatpush1.bf16.msra.mxu0 %v793
    %1578 = vmatprep.subr.bf16.mxu0 %v790
    %1579 = vmatpush1.bf16.msra.mxu0 %v789
    %1580 = vmatprep.subr.bf16.mxu0 %v786
    %1581 = vmatpush1.bf16.msra.mxu0 %v785
    %1582 = vmatprep.subr.bf16.mxu0 %v782
    %1583 = vmatpush1.bf16.msra.mxu0 %v781
    %1584 = vmatprep.subr.bf16.mxu0 %v778
    %1585 = vmatpush1.bf16.msra.mxu0 %v777
    %1586 = vmatprep.subr.bf16.mxu0 %v774
    %1587 = vmatpush1.bf16.msra.mxu0 %v773
    %1588 = vmatprep.subr.bf16.mxu0 %v770
    %1589 = vmatpush1.bf16.msra.mxu0 %v769
    %1590 = vmatprep.subr.bf16.mxu0 %v766
    %1591 = vmatpush1.bf16.msra.mxu0 %v765
    %1592 = vmatprep.subr.bf16.mxu0 0
    %1593 = vmatpush2.bf16.msra.mxu0 0
    %1594 = vmatprep.subr.bf16.mxu0 0
    %1595 = vmatpush2.bf16.msra.mxu0 0
    %1596 = vmatprep.subr.bf16.mxu0 0
    %1597 = vmatpush2.bf16.msra.mxu0 0
    %1598 = vmatprep.subr.bf16.mxu0 0
    %1599 = vmatpush2.bf16.msra.mxu0 0
    %1600 = vmatprep.subr.bf16.mxu0 0
    %1601 = vmatpush2.bf16.msra.mxu0 0
    %1602 = vmatprep.subr.bf16.mxu0 0
    %1603 = vmatpush2.bf16.msra.mxu0 0
    %1604 = vmatprep.subr.bf16.mxu0 0
    %1605 = vmatpush2.bf16.msra.mxu0 0
    %1606 = vmatprep.subr.bf16.mxu0 0
    %1607 = vmatpush2.bf16.msra.mxu0 0
    %1608 = vmatprep.mubr.bf16.mxu0 0
    %1609 = vmatmul.mubr.bf16.gmra.mxu0 %v1534
    %v1610 = vpop.f32.mrf.mxu0
    %v1611 = vadd.f32 0.0, %v1610
    %v1612 = vpop.f32.mrf.mxu0
    %v1613 = vadd.f32 0.0, %v1612
    %v1614 = vpop.f32.mrf.mxu0
    %v1615 = vpop.f32.mrf.mxu0
    %1616 = vdwg.mxu0
    %v1617 = vadd.f32 %v1530, %v1570
    %v1618 = vadd.f32 %v1531, %v1572
    %v1619 = vadd.f32 %v1532, %v1611
    %v1620 = vadd.f32 %v1533, %v1613
    %v1621 = vxor.u32 %v1617, 2147483648
    %v1622 = vmul.f32 %v1621, 1.442695
    %v1623 = vpow.pop %v1622
    %v1624 = vadd.f32 %v1623, 1.0
    %v1625 = vrcp.pop %v1624
    %v1626 = vmul.f32 1.0, %v1625
    %v1627 = vxor.u32 %v1618, 2147483648
    %v1628 = vmul.f32 %v1627, 1.442695
    %v1629 = vpow.pop %v1628
    %v1630 = vadd.f32 %v1629, 1.0
    %v1631 = vrcp.pop %v1630
    %v1632 = vmul.f32 1.0, %v1631
    %v1633 = vtanh.pop %v1619
    %v1634 = vxor.u32 %v1620, 2147483648
    %v1635 = vmul.f32 %v1634, 1.442695
    %v1636 = vpow.pop %v1635
    %v1637 = vadd.f32 %v1636, 1.0
    %v1638 = vrcp.pop %v1637
    %v1639 = vmul.f32 1.0, %v1638
    %v1640 = vmul.f32 %v1632, %v1524
    %v1641 = vmul.f32 %v1626, %v1633
    %v1642 = vadd.f32 %v1640, %v1641
    %v1643 = vtanh.pop %v1642
    %v1644 = vmul.f32 %v1639, %v1643
    %s1645 = scalar_lea.vmem [#allocation2], 112
    %v1646 = vld [vmem:[%s1645] sm:$0xff]
    %v1647 = vld [vmem:[%s1645 + $0x8] sm:$0xff]
    %v1648 = vunpack.c.l.bf16 %v1646
    %v1649 = vunpack.c.h.bf16 %v1646
    %v1650 = vunpack.c.l.bf16 %v1647
    %v1651 = vunpack.c.h.bf16 %v1647
    %v1652 = vpack.c.bf16 %v1644, %v1644
    %1653 = vmatprep.subr.bf16.mxu0 %v792
    %1654 = vmatpush1.bf16.msra.mxu0 %v791
    %1655 = vmatprep.subr.bf16.mxu0 %v788
    %1656 = vmatpush1.bf16.msra.mxu0 %v787
    %1657 = vmatprep.subr.bf16.mxu0 %v784
    %1658 = vmatpush1.bf16.msra.mxu0 %v783
    %1659 = vmatprep.subr.bf16.mxu0 %v780
    %1660 = vmatpush1.bf16.msra.mxu0 %v779
    %1661 = vmatprep.subr.bf16.mxu0 %v776
    %1662 = vmatpush1.bf16.msra.mxu0 %v775
    %1663 = vmatprep.subr.bf16.mxu0 %v772
    %1664 = vmatpush1.bf16.msra.mxu0 %v771
    %1665 = vmatprep.subr.bf16.mxu0 %v768
    %1666 = vmatpush1.bf16.msra.mxu0 %v767
    %1667 = vmatprep.subr.bf16.mxu0 %v764
    %1668 = vmatpush1.bf16.msra.mxu0 %v763
    %1669 = vmatprep.subr.bf16.mxu0 0
    %1670 = vmatpush2.bf16.msra.mxu0 0
    %1671 = vmatprep.subr.bf16.mxu0 0
    %1672 = vmatpush2.bf16.msra.mxu0 0
    %1673 = vmatprep.subr.bf16.mxu0 0
    %1674 = vmatpush2.bf16.msra.mxu0 0
    %1675 = vmatprep.subr.bf16.mxu0 0
    %1676 = vmatpush2.bf16.msra.mxu0 0
    %1677 = vmatprep.subr.bf16.mxu0 0
    %1678 = vmatpush2.bf16.msra.mxu0 0
    %1679 = vmatprep.subr.bf16.mxu0 0
    %1680 = vmatpush2.bf16.msra.mxu0 0
    %1681 = vmatprep.subr.bf16.mxu0 0
    %1682 = vmatpush2.bf16.msra.mxu0 0
    %1683 = vmatprep.subr.bf16.mxu0 0
    %1684 = vmatpush2.bf16.msra.mxu0 0
    %1685 = vmatprep.mubr.bf16.mxu0 0
    %1686 = vmatmul.mubr.bf16.gmra.mxu0 %v1652
    %v1687 = vpop.f32.mrf.mxu0
    %v1688 = vadd.f32 0.0, %v1687
    %v1689 = vpop.f32.mrf.mxu0
    %v1690 = vadd.f32 0.0, %v1689
    %v1691 = vpop.f32.mrf.mxu0
    %v1692 = vpop.f32.mrf.mxu0
    %1693 = vdwg.mxu0
    %1694 = vmatprep.subr.bf16.mxu0 %v794
    %1695 = vmatpush1.bf16.msra.mxu0 %v793
    %1696 = vmatprep.subr.bf16.mxu0 %v790
    %1697 = vmatpush1.bf16.msra.mxu0 %v789
    %1698 = vmatprep.subr.bf16.mxu0 %v786
    %1699 = vmatpush1.bf16.msra.mxu0 %v785
    %1700 = vmatprep.subr.bf16.mxu0 %v782
    %1701 = vmatpush1.bf16.msra.mxu0 %v781
    %1702 = vmatprep.subr.bf16.mxu0 %v778
    %1703 = vmatpush1.bf16.msra.mxu0 %v777
    %1704 = vmatprep.subr.bf16.mxu0 %v774
    %1705 = vmatpush1.bf16.msra.mxu0 %v773
    %1706 = vmatprep.subr.bf16.mxu0 %v770
    %1707 = vmatpush1.bf16.msra.mxu0 %v769
    %1708 = vmatprep.subr.bf16.mxu0 %v766
    %1709 = vmatpush1.bf16.msra.mxu0 %v765
    %1710 = vmatprep.subr.bf16.mxu0 0
    %1711 = vmatpush2.bf16.msra.mxu0 0
    %1712 = vmatprep.subr.bf16.mxu0 0
    %1713 = vmatpush2.bf16.msra.mxu0 0
    %1714 = vmatprep.subr.bf16.mxu0 0
    %1715 = vmatpush2.bf16.msra.mxu0 0
    %1716 = vmatprep.subr.bf16.mxu0 0
    %1717 = vmatpush2.bf16.msra.mxu0 0
    %1718 = vmatprep.subr.bf16.mxu0 0
    %1719 = vmatpush2.bf16.msra.mxu0 0
    %1720 = vmatprep.subr.bf16.mxu0 0
    %1721 = vmatpush2.bf16.msra.mxu0 0
    %1722 = vmatprep.subr.bf16.mxu0 0
    %1723 = vmatpush2.bf16.msra.mxu0 0
    %1724 = vmatprep.subr.bf16.mxu0 0
    %1725 = vmatpush2.bf16.msra.mxu0 0
    %1726 = vmatprep.mubr.bf16.mxu0 0
    %1727 = vmatmul.mubr.bf16.gmra.mxu0 %v1652
    %v1728 = vpop.f32.mrf.mxu0
    %v1729 = vadd.f32 0.0, %v1728
    %v1730 = vpop.f32.mrf.mxu0
    %v1731 = vadd.f32 0.0, %v1730
    %v1732 = vpop.f32.mrf.mxu0
    %v1733 = vpop.f32.mrf.mxu0
    %1734 = vdwg.mxu0
    %v1735 = vadd.f32 %v1648, %v1688
    %v1736 = vadd.f32 %v1649, %v1690
    %v1737 = vadd.f32 %v1650, %v1729
    %v1738 = vadd.f32 %v1651, %v1731
    %v1739 = vxor.u32 %v1735, 2147483648
    %v1740 = vmul.f32 %v1739, 1.442695
    %v1741 = vpow.pop %v1740
    %v1742 = vadd.f32 %v1741, 1.0
    %v1743 = vrcp.pop %v1742
    %v1744 = vmul.f32 1.0, %v1743
    %v1745 = vxor.u32 %v1736, 2147483648
    %v1746 = vmul.f32 %v1745, 1.442695
    %v1747 = vpow.pop %v1746
    %v1748 = vadd.f32 %v1747, 1.0
    %v1749 = vrcp.pop %v1748
    %v1750 = vmul.f32 1.0, %v1749
    %v1751 = vtanh.pop %v1737
    %v1752 = vxor.u32 %v1738, 2147483648
    %v1753 = vmul.f32 %v1752, 1.442695
    %v1754 = vpow.pop %v1753
    %v1755 = vadd.f32 %v1754, 1.0
    %v1756 = vrcp.pop %v1755
    %v1757 = vmul.f32 1.0, %v1756
    %v1758 = vmul.f32 %v1750, %v1642
    %v1759 = vmul.f32 %v1744, %v1751
    %v1760 = vadd.f32 %v1758, %v1759
    %v1761 = vtanh.pop %v1760
    %v1762 = vmul.f32 %v1757, %v1761
    %1763 = vst [vmem:[#allocation3] sm:$0xff] %v1762
    %1764 = vst [vmem:[#allocation4] sm:$0xff] %v1760
    // Predicated region
    $region46: #{tpu_custom_call.1} parent=1 // pred_check
      %p1765 = pneg %p84
    $region47: #{tpu_custom_call.1} parent=1 // pred_check_branch
      %1767 = sbr.rel (%p1765) target = $region49
    $region48: #{tpu_custom_call.1} parent=1 // pred_region
      %v1768 = vpack.c.bf16 %v1762, %v1762
      %v1769 = vld [vmem:[#allocation11] sm:$0xf]
      %v1770 = vld [vmem:[#allocation11 + $0x4] sm:$0xf]
      %v1771 = vld [vmem:[#allocation11 + $0x8] sm:$0xf]
      %v1772 = vld [vmem:[#allocation11 + $0xc] sm:$0xf]
      %v1773 = vld [vmem:[#allocation11 + $0x10] sm:$0xf]
      %v1774 = vld [vmem:[#allocation11 + $0x14] sm:$0xf]
      %v1775 = vld [vmem:[#allocation11 + $0x18] sm:$0xf]
      %v1776 = vld [vmem:[#allocation11 + $0x1c] sm:$0xf]
      %v1777 = vld [vmem:[#allocation11 + $0x20] sm:$0xf]
      %v1778 = vld [vmem:[#allocation11 + $0x24] sm:$0xf]
      %v1779 = vld [vmem:[#allocation11 + $0x28] sm:$0xf]
      %v1780 = vld [vmem:[#allocation11 + $0x2c] sm:$0xf]
      %v1781 = vld [vmem:[#allocation11 + $0x30] sm:$0xf]
      %v1782 = vld [vmem:[#allocation11 + $0x34] sm:$0xf]
      %v1783 = vld [vmem:[#allocation11 + $0x38] sm:$0xf]
      %v1784 = vld [vmem:[#allocation11 + $0x3c] sm:$0xf]
      %v1785 = vld [vmem:[%s5] sm:$0x1]
      %v1787 = vlaneseq
      %v1788 = vshrl.u32 %v1787, 7
      %v1789 = vsub.s32 0, %v1788
      %v1790 = vrot.slane %v1785, %v1789
      %v1808 = vunpack.c.l.b16 %v1769
      %v1809 = vunpack.c.l.b16 %v1770
      %v1810 = vunpack.c.l.b16 %v1771
      %v1811 = vunpack.c.l.b16 %v1772
      %v1812 = vunpack.c.l.b16 %v1773
      %v1813 = vunpack.c.l.b16 %v1774
      %v1814 = vunpack.c.l.b16 %v1775
      %v1815 = vunpack.c.l.b16 %v1776
      %v1816 = vunpack.c.l.b16 %v1777
      %v1817 = vunpack.c.l.b16 %v1778
      %v1818 = vunpack.c.l.b16 %v1779
      %v1819 = vunpack.c.l.b16 %v1780
      %v1820 = vunpack.c.l.b16 %v1781
      %v1821 = vunpack.c.l.b16 %v1782
      %v1822 = vunpack.c.l.b16 %v1783
      %v1823 = vunpack.c.l.b16 %v1784
      %v1824 = vpack.c.b16 %v1809, %v1808
      %v1825 = vpack.c.b16 %v1811, %v1810
      %v1826 = vpack.c.b16 %v1813, %v1812
      %v1827 = vpack.c.b16 %v1815, %v1814
      %v1828 = vpack.c.b16 %v1817, %v1816
      %v1829 = vpack.c.b16 %v1819, %v1818
      %v1830 = vpack.c.b16 %v1821, %v1820
      %v1831 = vpack.c.b16 %v1823, %v1822
      %1840 = vmatprep.subr.bf16.mxu0 0
      %1841 = vmatpush1.bf16.msra.mxu0 %v1831
      %1842 = vmatprep.subr.bf16.mxu0 0
      %1843 = vmatpush1.bf16.msra.mxu0 %v1830
      %1844 = vmatprep.subr.bf16.mxu0 0
      %1845 = vmatpush1.bf16.msra.mxu0 %v1829
      %1846 = vmatprep.subr.bf16.mxu0 0
      %1847 = vmatpush1.bf16.msra.mxu0 %v1828
      %1848 = vmatprep.subr.bf16.mxu0 0
      %1849 = vmatpush1.bf16.msra.mxu0 %v1827
      %1850 = vmatprep.subr.bf16.mxu0 0
      %1851 = vmatpush1.bf16.msra.mxu0 %v1826
      %1852 = vmatprep.subr.bf16.mxu0 0
      %1853 = vmatpush1.bf16.msra.mxu0 %v1825
      %1854 = vmatprep.subr.bf16.mxu0 0
      %1855 = vmatpush1.bf16.msra.mxu0 %v1824
      %1856 = vmatprep.subr.bf16.mxu0 0
      %1857 = vmatpush2.bf16.msra.mxu0 0
      %1858 = vmatprep.subr.bf16.mxu0 0
      %1859 = vmatpush2.bf16.msra.mxu0 0
      %1860 = vmatprep.subr.bf16.mxu0 0
      %1861 = vmatpush2.bf16.msra.mxu0 0
      %1862 = vmatprep.subr.bf16.mxu0 0
      %1863 = vmatpush2.bf16.msra.mxu0 0
      %1864 = vmatprep.subr.bf16.mxu0 0
      %1865 = vmatpush2.bf16.msra.mxu0 0
      %1866 = vmatprep.subr.bf16.mxu0 0
      %1867 = vmatpush2.bf16.msra.mxu0 0
      %1868 = vmatprep.subr.bf16.mxu0 0
      %1869 = vmatpush2.bf16.msra.mxu0 0
      %1870 = vmatprep.subr.bf16.mxu0 0
      %1871 = vmatpush2.bf16.msra.mxu0 0
      %1872 = vmatprep.mubr.bf16.mxu0 0
      %1873 = vmatmul.mubr.bf16.gmra.mxu0 %v1768
      %v1874 = vpop.f32.mrf.mxu0
      %v1875 = vadd.f32 %v1790, %v1874
      %v1876 = vpop.f32.mrf.mxu0
      %v1877 = vpop.f32.mrf.mxu0
      %v1878 = vpop.f32.mrf.mxu0
      %1879 = vdwg.mxu0
      %1880 = vst [vmem:[#allocation13] sm:$0xff] %v1875
      %1881 = vst [vmem:[#allocation14] sm:$0xff] %v1762
      %1882 = vst [vmem:[#allocation16] sm:$0xff] %v1760
    $region49: #{tpu_custom_call.1} parent=1 // pred_fallthru
      _
    // Predicated region
    $region50: #{tpu_custom_call.1} parent=1 // pred_check
      _
    $region51: #{tpu_custom_call.1} parent=1 // pred_check_branch
      %1884 = sbr.rel (0) target = $region53
    $region52: #{tpu_custom_call.1} parent=1 // pred_region
      %s1886 = ssub.s32 128, 128
      %1887 = vsyncadd [#allocation7], %s1886
      %s1889 = sshll.u32 [#allocation13], 4
      %s1890 = int_to_ptr.vmem [resolvable:$true] %s1889
      %1892 = dma.vmem_to_hbm [thread:$0]  %s1890, 128, %s6, [#allocation7]
    $region53: #{tpu_custom_call.1} parent=1 // pred_fallthru
      _
    // Predicated region
    $region54: #{tpu_custom_call.1} parent=1 // pred_check
      _
    $region55: #{tpu_custom_call.1} parent=1 // pred_check_branch
      %1894 = sbr.rel (0) target = $region57
    $region56: #{tpu_custom_call.1} parent=1 // pred_region
      %s1896 = ssub.s32 128, 128
      %1897 = vsyncadd [#allocation15], %s1896
      %s1899 = sshll.u32 [#allocation14], 4
      %s1900 = int_to_ptr.vmem [resolvable:$true] %s1899
      %1902 = dma.vmem_to_hbm [thread:$0]  %s1900, 128, %s7, [#allocation15]
    $region57: #{tpu_custom_call.1} parent=1 // pred_fallthru
      _
    // Predicated region
    $region58: #{tpu_custom_call.1} parent=1 // pred_check
      _
    $region59: #{tpu_custom_call.1} parent=1 // pred_check_branch
      %1904 = sbr.rel (0) target = $region61
    $region60: #{tpu_custom_call.1} parent=1 // pred_region
      %s1906 = ssub.s32 128, 128
      %1907 = vsyncadd [#allocation15], %s1906
      %s1909 = sshll.u32 [#allocation16], 4
      %s1910 = int_to_ptr.vmem [resolvable:$true] %s1909
      %1912 = dma.vmem_to_hbm [thread:$0]  %s1910, 128, %s8, [#allocation15]
    $region61: #{tpu_custom_call.1} parent=1 // pred_fallthru
      _
    // Predicated region
    $region62: #{tpu_custom_call.1} parent=1 // pred_check
      _
    $region63: #{tpu_custom_call.1} parent=1 // pred_check_branch
      %1914 = sbr.rel (0) target = $region65
    $region64: #{tpu_custom_call.1} parent=1 // pred_region
      %1915 = dma.done [#allocation7], 128
    $region65: #{tpu_custom_call.1} parent=1 // pred_fallthru
      _
    // Predicated region
    $region66: #{tpu_custom_call.1} parent=1 // pred_check
      _
    $region67: #{tpu_custom_call.1} parent=1 // pred_check_branch
      %1917 = sbr.rel (0) target = $region69
    $region68: #{tpu_custom_call.1} parent=1 // pred_region
      %1918 = dma.done [#allocation15], 128
    $region69: #{tpu_custom_call.1} parent=1 // pred_fallthru
      _
    // Predicated region
    $region70: #{tpu_custom_call.1} parent=1 // pred_check
      _
    $region71: #{tpu_custom_call.1} parent=1 // pred_check_branch
      %1920 = sbr.rel (0) target = $region73
    $region72: #{tpu_custom_call.1} parent=1 // pred_region
      %1921 = dma.done [#allocation15], 128
    $region73: #{tpu_custom_call.1} parent=1 // pred_fallthru
      _
    %1922 = vsyncpa [#allocation6], 1
    %1923 = vsyncpa [#allocation9], 1
    %1924 = vsyncpa [#allocation12], 1
    %1925 = vsyncpa [#allocation7], 1
    %1926 = vsyncpa [#allocation15], 1

</llo_original>
